<compile_context>
chip_gen: v5e
topology: v5e:2x2
jax: 0.10.0
libtpu: 0.0.40
codegen_flags: <defaults>
</compile_context>

<pallas_src>
import functools

import jax
import jax.numpy as jnp
from jax import lax
from jax.experimental import pallas as pl
from jax.experimental.pallas import tpu as pltpu


def _round_up(n, m):
    return ((n + m - 1) // m) * m


def _lstm_predictor_kernel(
    x_ref,      # (T, BCH, D)    time-major, batch chunk
    hc0_ref,    # (2L, BCH, H)   rows [0:L] = h0, rows [L:2L] = c0
    w_ref,      # (RW, 4H)       packed weight/bias slab (see pack_params)
    out_ref,    # (BCH, 4H)      fc result, lane-dense (cols >= O are zero)
    hcn_ref,    # (2L, BCH, H)   rows [0:L] = hn, rows [L:2L] = cn
    seq_ref,    # VMEM scratch (T, BCH, H): current layer's output sequence
    ih_ref,     # VMEM scratch (T, BCH, 4H): hoisted input projection
    *, T, L, H, D, O, BCH,
):
    G = 4 * H
    r_whh0 = L * H           # W_hh^T section start
    r_wpre = 2 * L * H       # W_pre^T section start
    r_wfc = r_wpre + D       # W_fc^T section start
    r_bias = r_wfc + H       # bias section start

    # ---- pre_fc + ReLU over all timesteps: one MXU matmul, off serial path ----
    x2 = x_ref[...].reshape(T * BCH, D)
    pre = jnp.dot(x2, w_ref[r_wpre:r_wpre + D, 0:H],
                  preferred_element_type=jnp.float32)
    pre = pre + w_ref[r_bias:r_bias + 1, 0:H]
    seq_ref[...] = jnp.maximum(pre, 0.0).reshape(T, BCH, H)

    # ---- stacked LSTM, PyTorch gate order (i, f, g, o) ----
    for l in range(L):
        # W_hh^T stays live in vregs across the whole layer (4 vregs at H=32).
        w_hh = w_ref[r_whh0 + l * H:r_whh0 + (l + 1) * H, :]        # (H, 4H)

        # Hoisted input projection for every timestep of this layer, spilled
        # to VMEM scratch so the unrolled recurrence only keeps (h, c) live.
        seq_flat = seq_ref[...].reshape(T * BCH, H)
        ih = jnp.dot(seq_flat, w_ref[l * H:(l + 1) * H, :],
                     preferred_element_type=jnp.float32)
        ih = ih + w_ref[r_bias + 1 + l:r_bias + 2 + l, :]           # b_ih + b_hh
        ih_ref[...] = ih.reshape(T, BCH, G)

        def step(t, carry):
            h, c = carry
            # Only h @ W_hh sits on the serial dependency chain.
            gates = ih_ref[t] + jnp.dot(h, w_hh,
                                        preferred_element_type=jnp.float32)
            sig = jax.nn.sigmoid(gates)        # one full-width (4H) sigmoid (EUP)
            tnh = jnp.tanh(gates)              # full-width tanh (EUP); extracts
            #                                    below are independent -> XLU overlap
            c_new = sig[:, H:2 * H] * c + sig[:, 0:H] * tnh[:, 2 * H:3 * H]
            h_new = sig[:, 3 * H:4 * H] * jnp.tanh(c_new)
            seq_ref[t] = h_new                 # input sequence for next layer
            return h_new, c_new

        h, c = lax.fori_loop(0, T, step, (hc0_ref[l], hc0_ref[L + l]),
                             unroll=True)
        hcn_ref[l] = h
        hcn_ref[L + l] = c

    # ---- final fc on the last timestep of the top layer ----
    # W_fc^T is zero-padded to 4H output columns -> full-lane (BCH, 128) store.
    res = jnp.dot(seq_ref[T - 1], w_ref[r_wfc:r_wfc + H, :],
                  preferred_element_type=jnp.float32)
    out_ref[...] = res + w_ref[r_bias + 1 + L:r_bias + 2 + L, :]


def pack_params(params):
    """One-time packing of ALL static weights into a single (RW, 4H) f32 slab.

    Row layout:
      [0        : L*H      )  W_ih^T, layer-major
      [L*H      : 2*L*H    )  W_hh^T, layer-major
      [2*L*H    : +D       )  W_pre^T            (cols 0:H)
      [.. +D    : +H       )  W_fc^T             (cols 0:O, zero-padded)
      [.. +H    : +(L+2)   )  biases: b_pre | (b_ih+b_hh per layer) | b_fc
    """
    H, D = params["w_pre"].shape
    O = params["w_fc"].shape[0]
    L = params["w_ih"].shape[0]
    G = 4 * H

    rw = 2 * L * H + D + H + (L + 2)
    RW = _round_up(rw, 8)                     # sublane-align the slab
    slab = jnp.zeros((RW, G), jnp.float32)
    for l in range(L):
        slab = slab.at[l * H:(l + 1) * H, :].set(params["w_ih"][l].T)
        slab = slab.at[(L + l) * H:(L + l + 1) * H, :].set(params["w_hh"][l].T)
    r = 2 * L * H
    slab = slab.at[r:r + D, :H].set(params["w_pre"].T)
    r += D
    slab = slab.at[r:r + H, :O].set(params["w_fc"].T)
    r += H
    slab = slab.at[r, :H].set(params["b_pre"])
    slab = slab.at[r + 1:r + 1 + L, :].set(params["b_ih"] + params["b_hh"])
    slab = slab.at[r + 1 + L, :O].set(params["b_fc"])

    dims = {"D": D, "H": H, "O": O, "L": L}
    return {"w_slab": slab}, dims


def lstm_predictor_forward(x, h0, c0, packed, dims):
    """x: (B, T, D), h0/c0: (L, B, H). Returns (out (B, O), (hn, cn))."""
    B, T, D = x.shape
    L, _, H = h0.shape
    O = dims["O"]
    G = 4 * H

    # Batch chunking: one sublane tile minimum, up to 128 rows per chunk so
    # large serving batches fill the MXU M dimension and (on v7x) the grid
    # axis can split chunks across the two TensorCores.
    BCH = min(_round_up(B, 8), 128)
    BPTOT = _round_up(B, BCH)
    n_chunks = BPTOT // BCH

    # Per-call input prep: time-major + zero-pad batch to the chunk multiple.
    # (Kept in the wrapper: one tiny XLA fusion each, in exchange for
    # guaranteed layout-preserving reshapes inside the kernel.)
    x_tbd = jnp.zeros((T, BPTOT, D), jnp.float32).at[:, :B, :].set(
        jnp.transpose(x, (1, 0, 2)))
    hc0 = jnp.zeros((2 * L, BPTOT, H), jnp.float32)
    hc0 = hc0.at[:L, :B, :].set(h0).at[L:, :B, :].set(c0)

    w_slab = packed["w_slab"]
    RW = w_slab.shape[0]

    kernel = functools.partial(_lstm_predictor_kernel,
                               T=T, L=L, H=H, D=D, O=O, BCH=BCH)

    # NOTE(v7x): total VMEM footprint here is << 1 MiB; if T/BCH/H grow, re-derive
    # against the 64 MiB (not 128 MiB) ceiling and add a T-blocked grid axis.
    out_p, hcn = pl.pallas_call(
        kernel,
        out_shape=(jax.ShapeDtypeStruct((BPTOT, G), jnp.float32),
                   jax.ShapeDtypeStruct((2 * L, BPTOT, H), jnp.float32)),
        grid=(n_chunks,),
        in_specs=[
            pl.BlockSpec((T, BCH, D), lambda i: (0, i, 0)),
            pl.BlockSpec((2 * L, BCH, H), lambda i: (0, i, 0)),
            pl.BlockSpec((RW, G), lambda i: (0, 0)),
        ],
        out_specs=(
            pl.BlockSpec((BCH, G), lambda i: (i, 0)),
            pl.BlockSpec((2 * L, BCH, H), lambda i: (0, i, 0)),
        ),
        scratch_shapes=[pltpu.VMEM((T, BCH, H), jnp.float32),
                        pltpu.VMEM((T, BCH, G), jnp.float32)],
        compiler_params=pltpu.CompilerParams(
            dimension_semantics=("parallel",)),
    )(x_tbd, hc0, w_slab)

    return out_p[:B, :O], (hcn[:L, :B], hcn[L:, :B])


def _reference_forward(x, h0, c0, params):
    """Pure-JAX reference mirroring the PyTorch module."""
    L, B, H = h0.shape
    T = x.shape[1]
    pre = jnp.maximum(
        jnp.einsum("btd,hd->bth", x, params["w_pre"]) + params["b_pre"], 0.0)
    seq = pre
    hn, cn = [], []
    for l in range(L):
        h, c = h0[l], c0[l]
        outs = []
        for t in range(T):
            gates = (seq[:, t, :] @ params["w_ih"][l].T + params["b_ih"][l]
                     + h @ params["w_hh"][l].T + params["b_hh"][l])
            i = jax.nn.sigmoid(gates[:, :H])
            f = jax.nn.sigmoid(gates[:, H:2 * H])
            g = jnp.tanh(gates[:, 2 * H:3 * H])
            o = jax.nn.sigmoid(gates[:, 3 * H:])
            c = f * c + i * g
            h = o * jnp.tanh(c)
            outs.append(h)
        seq = jnp.stack(outs, axis=1)
        hn.append(h)
        cn.append(c)
    out = seq[:, -1, :] @ params["w_fc"].T + params["b_fc"]
    return out, (jnp.stack(hn), jnp.stack(cn))


if __name__ == "__main__":
    # Small shapes consistent with the module's forward.
    B, T = 2, 8                  # batch, sequence length
    D, H, O, L = 16, 32, 4, 2    # input_dim, hidden_dim, output_dim, n_layers

    key = jax.random.PRNGKey(0)
    keys = jax.random.split(key, 9)

    params = {
        "w_pre": jax.random.normal(keys[0], (H, D), jnp.float32) * 0.1,
        "b_pre": jax.random.normal(keys[1], (H,), jnp.float32) * 0.1,
        "w_ih":  jax.random.normal(keys[2], (L, 4 * H, H), jnp.float32) * 0.1,
        "w_hh":  jax.random.normal(keys[3], (L, 4 * H, H), jnp.float32) * 0.1,
        "b_ih":  jax.random.normal(keys[4], (L, 4 * H), jnp.float32) * 0.1,
        "b_hh":  jax.random.normal(keys[5], (L, 4 * H), jnp.float32) * 0.1,
        "w_fc":  jax.random.normal(keys[6], (O, H), jnp.float32) * 0.1,
        "b_fc":  jax.random.normal(keys[7], (O,), jnp.float32) * 0.1,
    }

    x = jax.random.normal(keys[8], (B, T, D), jnp.float32)
    h0 = jnp.zeros((L, B, H), jnp.float32)   # init_hidden()
    c0 = jnp.zeros((L, B, H), jnp.float32)

    packed, dims = pack_params(params)       # one-time weight packing
    out, (hn, cn) = lstm_predictor_forward(x, h0, c0, packed, dims)
    jax.block_until_ready((out, hn, cn))

    ref_out, (ref_hn, ref_cn) = _reference_forward(x, h0, c0, params)
    assert jnp.allclose(out, ref_out, atol=1e-4, rtol=1e-4)
    assert jnp.allclose(hn, ref_hn, atol=1e-4, rtol=1e-4)
    assert jnp.allclose(cn, ref_cn, atol=1e-4, rtol=1e-4)

    print("KERNEL_OK")
</pallas_src>

<mosaic_0001>
module attributes {stable_mosaic.version = 11 : i64} {
  func.func @_lstm_predictor_kernel(%arg0: i32, %arg1: memref<8x8x16xf32, #tpu.memory_space<vmem>>, %arg2: memref<4x8x32xf32, #tpu.memory_space<vmem>>, %arg3: memref<184x128xf32, #tpu.memory_space<vmem>>, %arg4: memref<8x128xf32, #tpu.memory_space<vmem>>, %arg5: memref<4x8x32xf32, #tpu.memory_space<vmem>>, %arg6: memref<8x8x32xf32, #tpu.memory_space<vmem>>, %arg7: memref<8x8x128xf32, #tpu.memory_space<vmem>>) attributes {dimension_semantics = [#tpu.dimension_semantics<parallel>], iteration_bounds = array<i64: 1>, scalar_prefetch = 0 : i64, scratch_operands = 2 : i64, tpu.core_type = #tpu.core_type<tc>, window_params = [{transform_indices = @transform_0, window_bounds = array<i64: 8, 8, 16>}, {transform_indices = @transform_1, window_bounds = array<i64: 4, 8, 32>}, {pipeline_mode = #tpu.pipeline_mode<synchronous>, transform_indices = @transform_2, window_bounds = array<i64: 184, 128>}, {transform_indices = @transform_3, window_bounds = array<i64: 8, 128>}, {transform_indices = @transform_4, window_bounds = array<i64: 4, 8, 32>}]} {
    %c0 = arith.constant 0 : index
    %c0_0 = arith.constant 0 : index
    %c0_1 = arith.constant 0 : index
    %0 = vector.load %arg1[%c0, %c0_0, %c0_1] : memref<8x8x16xf32, #tpu.memory_space<vmem>>, vector<8x8x16xf32>
    %1 = vector.shape_cast %0 : vector<8x8x16xf32> to vector<64x16xf32>
    %c128 = arith.constant 128 : index
    %c0_2 = arith.constant 0 : index
    %2 = vector.load %arg3[%c128, %c0_2] : memref<184x128xf32, #tpu.memory_space<vmem>>, vector<16x32xf32>
    %cst = arith.constant dense<0.000000e+00> : vector<64x32xf32>
    %3 = tpu.matmul %1, %2, %cst {dimension_numbers = #tpu.dot_dimension_numbers<[1], [0], [0], [1], [0, 0, 1, 1], [], []>} : vector<64x16xf32>, vector<16x32xf32>, vector<64x32xf32> -> vector<64x32xf32>
    %c176 = arith.constant 176 : index
    %c0_3 = arith.constant 0 : index
    %4 = vector.load %arg3[%c176, %c0_3] : memref<184x128xf32, #tpu.memory_space<vmem>>, vector<1x32xf32>
    %5 = vector.broadcast %4 : vector<1x32xf32> to vector<64x32xf32>
    %6 = arith.addf %3, %5 : vector<64x32xf32>
    %cst_4 = arith.constant 0.000000e+00 : f32
    %7 = vector.broadcast %cst_4 : f32 to vector<64x32xf32>
    %8 = arith.maximumf %6, %7 : vector<64x32xf32>
    %9 = vector.shape_cast %8 : vector<64x32xf32> to vector<8x8x32xf32>
    %c0_5 = arith.constant 0 : index
    %c0_6 = arith.constant 0 : index
    %c0_7 = arith.constant 0 : index
    %10 = vector.load %arg6[%c0_5, %c0_6, %c0_7] : memref<8x8x32xf32, #tpu.memory_space<vmem>>, vector<8x8x32xf32>
    tpu.vector_store %arg6[%c0_5, %c0_6, %c0_7], %9 {strides = array<i32>} : memref<8x8x32xf32, #tpu.memory_space<vmem>>, vector<8x8x32xf32>,
    %c64 = arith.constant 64 : index
    %c0_8 = arith.constant 0 : index
    %11 = vector.load %arg3[%c64, %c0_8] : memref<184x128xf32, #tpu.memory_space<vmem>>, vector<32x128xf32>
    %c0_9 = arith.constant 0 : index
    %c0_10 = arith.constant 0 : index
    %c0_11 = arith.constant 0 : index
    %12 = vector.load %arg6[%c0_9, %c0_10, %c0_11] : memref<8x8x32xf32, #tpu.memory_space<vmem>>, vector<8x8x32xf32>
    %13 = vector.shape_cast %12 : vector<8x8x32xf32> to vector<64x32xf32>
    %c0_12 = arith.constant 0 : index
    %c0_13 = arith.constant 0 : index
    %14 = vector.load %arg3[%c0_12, %c0_13] : memref<184x128xf32, #tpu.memory_space<vmem>>, vector<32x128xf32>
    %cst_14 = arith.constant dense<0.000000e+00> : vector<64x128xf32>
    %15 = tpu.matmul %13, %14, %cst_14 {dimension_numbers = #tpu.dot_dimension_numbers<[1], [0], [0], [1], [0, 0, 1, 1], [], []>} : vector<64x32xf32>, vector<32x128xf32>, vector<64x128xf32> -> vector<64x128xf32>
    %c177 = arith.constant 177 : index
    %c0_15 = arith.constant 0 : index
    %16 = vector.load %arg3[%c177, %c0_15] : memref<184x128xf32, #tpu.memory_space<vmem>>, vector<1x128xf32>
    %17 = vector.broadcast %16 : vector<1x128xf32> to vector<64x128xf32>
    %18 = arith.addf %15, %17 : vector<64x128xf32>
    %19 = vector.shape_cast %18 : vector<64x128xf32> to vector<8x8x128xf32>
    %c0_16 = arith.constant 0 : index
    %c0_17 = arith.constant 0 : index
    %c0_18 = arith.constant 0 : index
    %20 = vector.load %arg7[%c0_16, %c0_17, %c0_18] : memref<8x8x128xf32, #tpu.memory_space<vmem>>, vector<8x8x128xf32>
    tpu.vector_store %arg7[%c0_16, %c0_17, %c0_18], %19 {strides = array<i32>} : memref<8x8x128xf32, #tpu.memory_space<vmem>>, vector<8x8x128xf32>,
    %c0_19 = arith.constant 0 : index
    %c0_20 = arith.constant 0 : index
    %c0_21 = arith.constant 0 : index
    %21 = vector.load %arg2[%c0_19, %c0_20, %c0_21] : memref<4x8x32xf32, #tpu.memory_space<vmem>>, vector<1x8x32xf32>
    %22 = vector.shape_cast %21 : vector<1x8x32xf32> to vector<8x32xf32>
    %c2 = arith.constant 2 : index
    %c0_22 = arith.constant 0 : index
    %c0_23 = arith.constant 0 : index
    %23 = vector.load %arg2[%c2, %c0_22, %c0_23] : memref<4x8x32xf32, #tpu.memory_space<vmem>>, vector<1x8x32xf32>
    %24 = vector.shape_cast %23 : vector<1x8x32xf32> to vector<8x32xf32>
    %c0_i32 = arith.constant 0 : i32
    %25 = arith.index_cast %c0_i32 : i32 to index
    %c0_24 = arith.constant 0 : index
    %c0_25 = arith.constant 0 : index
    %26 = vector.load %arg7[%25, %c0_24, %c0_25] : memref<8x8x128xf32, #tpu.memory_space<vmem>>, vector<1x8x128xf32>
    %27 = vector.shape_cast %26 : vector<1x8x128xf32> to vector<8x128xf32>
    %cst_26 = arith.constant dense<0.000000e+00> : vector<8x128xf32>
    %28 = tpu.matmul %22, %11, %cst_26 {dimension_numbers = #tpu.dot_dimension_numbers<[1], [0], [0], [1], [0, 0, 1, 1], [], []>} : vector<8x32xf32>, vector<32x128xf32>, vector<8x128xf32> -> vector<8x128xf32>
    %29 = arith.addf %27, %28 : vector<8x128xf32>
    %30 = arith.negf %29 : vector<8x128xf32>
    %31 = math.exp %30 : vector<8x128xf32>
    %cst_27 = arith.constant 1.000000e+00 : f32
    %32 = vector.broadcast %cst_27 : f32 to vector<8x128xf32>
    %33 = arith.addf %32, %31 : vector<8x128xf32>
    %34 = arith.divf %32, %33 : vector<8x128xf32>
    %35 = math.tanh %29 : vector<8x128xf32>
    %36 = vector.extract_strided_slice %34 {offsets = [0, 32], sizes = [8, 32], strides = [1, 1]} : vector<8x128xf32> to vector<8x32xf32>
    %37 = arith.mulf %36, %24 : vector<8x32xf32>
    %38 = vector.extract_strided_slice %34 {offsets = [0, 0], sizes = [8, 32], strides = [1, 1]} : vector<8x128xf32> to vector<8x32xf32>
    %39 = vector.extract_strided_slice %35 {offsets = [0, 64], sizes = [8, 32], strides = [1, 1]} : vector<8x128xf32> to vector<8x32xf32>
    %40 = arith.mulf %38, %39 : vector<8x32xf32>
    %41 = arith.addf %37, %40 : vector<8x32xf32>
    %42 = vector.extract_strided_slice %34 {offsets = [0, 96], sizes = [8, 32], strides = [1, 1]} : vector<8x128xf32> to vector<8x32xf32>
    %43 = math.tanh %41 : vector<8x32xf32>
    %44 = arith.mulf %42, %43 : vector<8x32xf32>
    %45 = arith.index_cast %c0_i32 : i32 to index
    %c0_28 = arith.constant 0 : index
    %c0_29 = arith.constant 0 : index
    %46 = vector.load %arg6[%45, %c0_28, %c0_29] : memref<8x8x32xf32, #tpu.memory_space<vmem>>, vector<1x8x32xf32>
    %47 = vector.shape_cast %46 : vector<1x8x32xf32> to vector<8x32xf32>
    %48 = vector.shape_cast %44 : vector<8x32xf32> to vector<1x8x32xf32>
    tpu.vector_store %arg6[%45, %c0_28, %c0_29], %48 {strides = array<i32>} : memref<8x8x32xf32, #tpu.memory_space<vmem>>, vector<1x8x32xf32>,
    %c1_i32 = arith.constant 1 : i32
    %49 = arith.index_cast %c1_i32 : i32 to index
    %c0_30 = arith.constant 0 : index
    %c0_31 = arith.constant 0 : index
    %50 = vector.load %arg7[%49, %c0_30, %c0_31] : memref<8x8x128xf32, #tpu.memory_space<vmem>>, vector<1x8x128xf32>
    %51 = vector.shape_cast %50 : vector<1x8x128xf32> to vector<8x128xf32>
    %cst_32 = arith.constant dense<0.000000e+00> : vector<8x128xf32>
    %52 = tpu.matmul %44, %11, %cst_32 {dimension_numbers = #tpu.dot_dimension_numbers<[1], [0], [0], [1], [0, 0, 1, 1], [], []>} : vector<8x32xf32>, vector<32x128xf32>, vector<8x128xf32> -> vector<8x128xf32>
    %53 = arith.addf %51, %52 : vector<8x128xf32>
    %54 = arith.negf %53 : vector<8x128xf32>
    %55 = math.exp %54 : vector<8x128xf32>
    %cst_33 = arith.constant 1.000000e+00 : f32
    %56 = vector.broadcast %cst_33 : f32 to vector<8x128xf32>
    %57 = arith.addf %56, %55 : vector<8x128xf32>
    %58 = arith.divf %56, %57 : vector<8x128xf32>
    %59 = math.tanh %53 : vector<8x128xf32>
    %60 = vector.extract_strided_slice %58 {offsets = [0, 32], sizes = [8, 32], strides = [1, 1]} : vector<8x128xf32> to vector<8x32xf32>
    %61 = arith.mulf %60, %41 : vector<8x32xf32>
    %62 = vector.extract_strided_slice %58 {offsets = [0, 0], sizes = [8, 32], strides = [1, 1]} : vector<8x128xf32> to vector<8x32xf32>
    %63 = vector.extract_strided_slice %59 {offsets = [0, 64], sizes = [8, 32], strides = [1, 1]} : vector<8x128xf32> to vector<8x32xf32>
    %64 = arith.mulf %62, %63 : vector<8x32xf32>
    %65 = arith.addf %61, %64 : vector<8x32xf32>
    %66 = vector.extract_strided_slice %58 {offsets = [0, 96], sizes = [8, 32], strides = [1, 1]} : vector<8x128xf32> to vector<8x32xf32>
    %67 = math.tanh %65 : vector<8x32xf32>
    %68 = arith.mulf %66, %67 : vector<8x32xf32>
    %69 = arith.index_cast %c1_i32 : i32 to index
    %c0_34 = arith.constant 0 : index
    %c0_35 = arith.constant 0 : index
    %70 = vector.load %arg6[%69, %c0_34, %c0_35] : memref<8x8x32xf32, #tpu.memory_space<vmem>>, vector<1x8x32xf32>
    %71 = vector.shape_cast %70 : vector<1x8x32xf32> to vector<8x32xf32>
    %72 = vector.shape_cast %68 : vector<8x32xf32> to vector<1x8x32xf32>
    tpu.vector_store %arg6[%69, %c0_34, %c0_35], %72 {strides = array<i32>} : memref<8x8x32xf32, #tpu.memory_space<vmem>>, vector<1x8x32xf32>,
    %c2_i32 = arith.constant 2 : i32
    %73 = arith.index_cast %c2_i32 : i32 to index
    %c0_36 = arith.constant 0 : index
    %c0_37 = arith.constant 0 : index
    %74 = vector.load %arg7[%73, %c0_36, %c0_37] : memref<8x8x128xf32, #tpu.memory_space<vmem>>, vector<1x8x128xf32>
    %75 = vector.shape_cast %74 : vector<1x8x128xf32> to vector<8x128xf32>
    %cst_38 = arith.constant dense<0.000000e+00> : vector<8x128xf32>
    %76 = tpu.matmul %68, %11, %cst_38 {dimension_numbers = #tpu.dot_dimension_numbers<[1], [0], [0], [1], [0, 0, 1, 1], [], []>} : vector<8x32xf32>, vector<32x128xf32>, vector<8x128xf32> -> vector<8x128xf32>
    %77 = arith.addf %75, %76 : vector<8x128xf32>
    %78 = arith.negf %77 : vector<8x128xf32>
    %79 = math.exp %78 : vector<8x128xf32>
    %cst_39 = arith.constant 1.000000e+00 : f32
    %80 = vector.broadcast %cst_39 : f32 to vector<8x128xf32>
    %81 = arith.addf %80, %79 : vector<8x128xf32>
    %82 = arith.divf %80, %81 : vector<8x128xf32>
    %83 = math.tanh %77 : vector<8x128xf32>
    %84 = vector.extract_strided_slice %82 {offsets = [0, 32], sizes = [8, 32], strides = [1, 1]} : vector<8x128xf32> to vector<8x32xf32>
    %85 = arith.mulf %84, %65 : vector<8x32xf32>
    %86 = vector.extract_strided_slice %82 {offsets = [0, 0], sizes = [8, 32], strides = [1, 1]} : vector<8x128xf32> to vector<8x32xf32>
    %87 = vector.extract_strided_slice %83 {offsets = [0, 64], sizes = [8, 32], strides = [1, 1]} : vector<8x128xf32> to vector<8x32xf32>
    %88 = arith.mulf %86, %87 : vector<8x32xf32>
    %89 = arith.addf %85, %88 : vector<8x32xf32>
    %90 = vector.extract_strided_slice %82 {offsets = [0, 96], sizes = [8, 32], strides = [1, 1]} : vector<8x128xf32> to vector<8x32xf32>
    %91 = math.tanh %89 : vector<8x32xf32>
    %92 = arith.mulf %90, %91 : vector<8x32xf32>
    %93 = arith.index_cast %c2_i32 : i32 to index
    %c0_40 = arith.constant 0 : index
    %c0_41 = arith.constant 0 : index
    %94 = vector.load %arg6[%93, %c0_40, %c0_41] : memref<8x8x32xf32, #tpu.memory_space<vmem>>, vector<1x8x32xf32>
    %95 = vector.shape_cast %94 : vector<1x8x32xf32> to vector<8x32xf32>
    %96 = vector.shape_cast %92 : vector<8x32xf32> to vector<1x8x32xf32>
    tpu.vector_store %arg6[%93, %c0_40, %c0_41], %96 {strides = array<i32>} : memref<8x8x32xf32, #tpu.memory_space<vmem>>, vector<1x8x32xf32>,
    %c3_i32 = arith.constant 3 : i32
    %97 = arith.index_cast %c3_i32 : i32 to index
    %c0_42 = arith.constant 0 : index
    %c0_43 = arith.constant 0 : index
    %98 = vector.load %arg7[%97, %c0_42, %c0_43] : memref<8x8x128xf32, #tpu.memory_space<vmem>>, vector<1x8x128xf32>
    %99 = vector.shape_cast %98 : vector<1x8x128xf32> to vector<8x128xf32>
    %cst_44 = arith.constant dense<0.000000e+00> : vector<8x128xf32>
    %100 = tpu.matmul %92, %11, %cst_44 {dimension_numbers = #tpu.dot_dimension_numbers<[1], [0], [0], [1], [0, 0, 1, 1], [], []>} : vector<8x32xf32>, vector<32x128xf32>, vector<8x128xf32> -> vector<8x128xf32>
    %101 = arith.addf %99, %100 : vector<8x128xf32>
    %102 = arith.negf %101 : vector<8x128xf32>
    %103 = math.exp %102 : vector<8x128xf32>
    %cst_45 = arith.constant 1.000000e+00 : f32
    %104 = vector.broadcast %cst_45 : f32 to vector<8x128xf32>
    %105 = arith.addf %104, %103 : vector<8x128xf32>
    %106 = arith.divf %104, %105 : vector<8x128xf32>
    %107 = math.tanh %101 : vector<8x128xf32>
    %108 = vector.extract_strided_slice %106 {offsets = [0, 32], sizes = [8, 32], strides = [1, 1]} : vector<8x128xf32> to vector<8x32xf32>
    %109 = arith.mulf %108, %89 : vector<8x32xf32>
    %110 = vector.extract_strided_slice %106 {offsets = [0, 0], sizes = [8, 32], strides = [1, 1]} : vector<8x128xf32> to vector<8x32xf32>
    %111 = vector.extract_strided_slice %107 {offsets = [0, 64], sizes = [8, 32], strides = [1, 1]} : vector<8x128xf32> to vector<8x32xf32>
    %112 = arith.mulf %110, %111 : vector<8x32xf32>
    %113 = arith.addf %109, %112 : vector<8x32xf32>
    %114 = vector.extract_strided_slice %106 {offsets = [0, 96], sizes = [8, 32], strides = [1, 1]} : vector<8x128xf32> to vector<8x32xf32>
    %115 = math.tanh %113 : vector<8x32xf32>
    %116 = arith.mulf %114, %115 : vector<8x32xf32>
    %117 = arith.index_cast %c3_i32 : i32 to index
    %c0_46 = arith.constant 0 : index
    %c0_47 = arith.constant 0 : index
    %118 = vector.load %arg6[%117, %c0_46, %c0_47] : memref<8x8x32xf32, #tpu.memory_space<vmem>>, vector<1x8x32xf32>
    %119 = vector.shape_cast %118 : vector<1x8x32xf32> to vector<8x32xf32>
    %120 = vector.shape_cast %116 : vector<8x32xf32> to vector<1x8x32xf32>
    tpu.vector_store %arg6[%117, %c0_46, %c0_47], %120 {strides = array<i32>} : memref<8x8x32xf32, #tpu.memory_space<vmem>>, vector<1x8x32xf32>,
    %c4_i32 = arith.constant 4 : i32
    %121 = arith.index_cast %c4_i32 : i32 to index
    %c0_48 = arith.constant 0 : index
    %c0_49 = arith.constant 0 : index
    %122 = vector.load %arg7[%121, %c0_48, %c0_49] : memref<8x8x128xf32, #tpu.memory_space<vmem>>, vector<1x8x128xf32>
    %123 = vector.shape_cast %122 : vector<1x8x128xf32> to vector<8x128xf32>
    %cst_50 = arith.constant dense<0.000000e+00> : vector<8x128xf32>
    %124 = tpu.matmul %116, %11, %cst_50 {dimension_numbers = #tpu.dot_dimension_numbers<[1], [0], [0], [1], [0, 0, 1, 1], [], []>} : vector<8x32xf32>, vector<32x128xf32>, vector<8x128xf32> -> vector<8x128xf32>
    %125 = arith.addf %123, %124 : vector<8x128xf32>
    %126 = arith.negf %125 : vector<8x128xf32>
    %127 = math.exp %126 : vector<8x128xf32>
    %cst_51 = arith.constant 1.000000e+00 : f32
    %128 = vector.broadcast %cst_51 : f32 to vector<8x128xf32>
    %129 = arith.addf %128, %127 : vector<8x128xf32>
    %130 = arith.divf %128, %129 : vector<8x128xf32>
    %131 = math.tanh %125 : vector<8x128xf32>
    %132 = vector.extract_strided_slice %130 {offsets = [0, 32], sizes = [8, 32], strides = [1, 1]} : vector<8x128xf32> to vector<8x32xf32>
    %133 = arith.mulf %132, %113 : vector<8x32xf32>
    %134 = vector.extract_strided_slice %130 {offsets = [0, 0], sizes = [8, 32], strides = [1, 1]} : vector<8x128xf32> to vector<8x32xf32>
    %135 = vector.extract_strided_slice %131 {offsets = [0, 64], sizes = [8, 32], strides = [1, 1]} : vector<8x128xf32> to vector<8x32xf32>
    %136 = arith.mulf %134, %135 : vector<8x32xf32>
    %137 = arith.addf %133, %136 : vector<8x32xf32>
    %138 = vector.extract_strided_slice %130 {offsets = [0, 96], sizes = [8, 32], strides = [1, 1]} : vector<8x128xf32> to vector<8x32xf32>
    %139 = math.tanh %137 : vector<8x32xf32>
    %140 = arith.mulf %138, %139 : vector<8x32xf32>
    %141 = arith.index_cast %c4_i32 : i32 to index
    %c0_52 = arith.constant 0 : index
    %c0_53 = arith.constant 0 : index
    %142 = vector.load %arg6[%141, %c0_52, %c0_53] : memref<8x8x32xf32, #tpu.memory_space<vmem>>, vector<1x8x32xf32>
    %143 = vector.shape_cast %142 : vector<1x8x32xf32> to vector<8x32xf32>
    %144 = vector.shape_cast %140 : vector<8x32xf32> to vector<1x8x32xf32>
    tpu.vector_store %arg6[%141, %c0_52, %c0_53], %144 {strides = array<i32>} : memref<8x8x32xf32, #tpu.memory_space<vmem>>, vector<1x8x32xf32>,
    %c5_i32 = arith.constant 5 : i32
    %145 = arith.index_cast %c5_i32 : i32 to index
    %c0_54 = arith.constant 0 : index
    %c0_55 = arith.constant 0 : index
    %146 = vector.load %arg7[%145, %c0_54, %c0_55] : memref<8x8x128xf32, #tpu.memory_space<vmem>>, vector<1x8x128xf32>
    %147 = vector.shape_cast %146 : vector<1x8x128xf32> to vector<8x128xf32>
    %cst_56 = arith.constant dense<0.000000e+00> : vector<8x128xf32>
    %148 = tpu.matmul %140, %11, %cst_56 {dimension_numbers = #tpu.dot_dimension_numbers<[1], [0], [0], [1], [0, 0, 1, 1], [], []>} : vector<8x32xf32>, vector<32x128xf32>, vector<8x128xf32> -> vector<8x128xf32>
    %149 = arith.addf %147, %148 : vector<8x128xf32>
    %150 = arith.negf %149 : vector<8x128xf32>
    %151 = math.exp %150 : vector<8x128xf32>
    %cst_57 = arith.constant 1.000000e+00 : f32
    %152 = vector.broadcast %cst_57 : f32 to vector<8x128xf32>
    %153 = arith.addf %152, %151 : vector<8x128xf32>
    %154 = arith.divf %152, %153 : vector<8x128xf32>
    %155 = math.tanh %149 : vector<8x128xf32>
    %156 = vector.extract_strided_slice %154 {offsets = [0, 32], sizes = [8, 32], strides = [1, 1]} : vector<8x128xf32> to vector<8x32xf32>
    %157 = arith.mulf %156, %137 : vector<8x32xf32>
    %158 = vector.extract_strided_slice %154 {offsets = [0, 0], sizes = [8, 32], strides = [1, 1]} : vector<8x128xf32> to vector<8x32xf32>
    %159 = vector.extract_strided_slice %155 {offsets = [0, 64], sizes = [8, 32], strides = [1, 1]} : vector<8x128xf32> to vector<8x32xf32>
    %160 = arith.mulf %158, %159 : vector<8x32xf32>
    %161 = arith.addf %157, %160 : vector<8x32xf32>
    %162 = vector.extract_strided_slice %154 {offsets = [0, 96], sizes = [8, 32], strides = [1, 1]} : vector<8x128xf32> to vector<8x32xf32>
    %163 = math.tanh %161 : vector<8x32xf32>
    %164 = arith.mulf %162, %163 : vector<8x32xf32>
    %165 = arith.index_cast %c5_i32 : i32 to index
    %c0_58 = arith.constant 0 : index
    %c0_59 = arith.constant 0 : index
    %166 = vector.load %arg6[%165, %c0_58, %c0_59] : memref<8x8x32xf32, #tpu.memory_space<vmem>>, vector<1x8x32xf32>
    %167 = vector.shape_cast %166 : vector<1x8x32xf32> to vector<8x32xf32>
    %168 = vector.shape_cast %164 : vector<8x32xf32> to vector<1x8x32xf32>
    tpu.vector_store %arg6[%165, %c0_58, %c0_59], %168 {strides = array<i32>} : memref<8x8x32xf32, #tpu.memory_space<vmem>>, vector<1x8x32xf32>,
    %c6_i32 = arith.constant 6 : i32
    %169 = arith.index_cast %c6_i32 : i32 to index
    %c0_60 = arith.constant 0 : index
    %c0_61 = arith.constant 0 : index
    %170 = vector.load %arg7[%169, %c0_60, %c0_61] : memref<8x8x128xf32, #tpu.memory_space<vmem>>, vector<1x8x128xf32>
    %171 = vector.shape_cast %170 : vector<1x8x128xf32> to vector<8x128xf32>
    %cst_62 = arith.constant dense<0.000000e+00> : vector<8x128xf32>
    %172 = tpu.matmul %164, %11, %cst_62 {dimension_numbers = #tpu.dot_dimension_numbers<[1], [0], [0], [1], [0, 0, 1, 1], [], []>} : vector<8x32xf32>, vector<32x128xf32>, vector<8x128xf32> -> vector<8x128xf32>
    %173 = arith.addf %171, %172 : vector<8x128xf32>
    %174 = arith.negf %173 : vector<8x128xf32>
    %175 = math.exp %174 : vector<8x128xf32>
    %cst_63 = arith.constant 1.000000e+00 : f32
    %176 = vector.broadcast %cst_63 : f32 to vector<8x128xf32>
    %177 = arith.addf %176, %175 : vector<8x128xf32>
    %178 = arith.divf %176, %177 : vector<8x128xf32>
    %179 = math.tanh %173 : vector<8x128xf32>
    %180 = vector.extract_strided_slice %178 {offsets = [0, 32], sizes = [8, 32], strides = [1, 1]} : vector<8x128xf32> to vector<8x32xf32>
    %181 = arith.mulf %180, %161 : vector<8x32xf32>
    %182 = vector.extract_strided_slice %178 {offsets = [0, 0], sizes = [8, 32], strides = [1, 1]} : vector<8x128xf32> to vector<8x32xf32>
    %183 = vector.extract_strided_slice %179 {offsets = [0, 64], sizes = [8, 32], strides = [1, 1]} : vector<8x128xf32> to vector<8x32xf32>
    %184 = arith.mulf %182, %183 : vector<8x32xf32>
    %185 = arith.addf %181, %184 : vector<8x32xf32>
    %186 = vector.extract_strided_slice %178 {offsets = [0, 96], sizes = [8, 32], strides = [1, 1]} : vector<8x128xf32> to vector<8x32xf32>
    %187 = math.tanh %185 : vector<8x32xf32>
    %188 = arith.mulf %186, %187 : vector<8x32xf32>
    %189 = arith.index_cast %c6_i32 : i32 to index
    %c0_64 = arith.constant 0 : index
    %c0_65 = arith.constant 0 : index
    %190 = vector.load %arg6[%189, %c0_64, %c0_65] : memref<8x8x32xf32, #tpu.memory_space<vmem>>, vector<1x8x32xf32>
    %191 = vector.shape_cast %190 : vector<1x8x32xf32> to vector<8x32xf32>
    %192 = vector.shape_cast %188 : vector<8x32xf32> to vector<1x8x32xf32>
    tpu.vector_store %arg6[%189, %c0_64, %c0_65], %192 {strides = array<i32>} : memref<8x8x32xf32, #tpu.memory_space<vmem>>, vector<1x8x32xf32>,
    %c7_i32 = arith.constant 7 : i32
    %193 = arith.index_cast %c7_i32 : i32 to index
    %c0_66 = arith.constant 0 : index
    %c0_67 = arith.constant 0 : index
    %194 = vector.load %arg7[%193, %c0_66, %c0_67] : memref<8x8x128xf32, #tpu.memory_space<vmem>>, vector<1x8x128xf32>
    %195 = vector.shape_cast %194 : vector<1x8x128xf32> to vector<8x128xf32>
    %cst_68 = arith.constant dense<0.000000e+00> : vector<8x128xf32>
    %196 = tpu.matmul %188, %11, %cst_68 {dimension_numbers = #tpu.dot_dimension_numbers<[1], [0], [0], [1], [0, 0, 1, 1], [], []>} : vector<8x32xf32>, vector<32x128xf32>, vector<8x128xf32> -> vector<8x128xf32>
    %197 = arith.addf %195, %196 : vector<8x128xf32>
    %198 = arith.negf %197 : vector<8x128xf32>
    %199 = math.exp %198 : vector<8x128xf32>
    %cst_69 = arith.constant 1.000000e+00 : f32
    %200 = vector.broadcast %cst_69 : f32 to vector<8x128xf32>
    %201 = arith.addf %200, %199 : vector<8x128xf32>
    %202 = arith.divf %200, %201 : vector<8x128xf32>
    %203 = math.tanh %197 : vector<8x128xf32>
    %204 = vector.extract_strided_slice %202 {offsets = [0, 32], sizes = [8, 32], strides = [1, 1]} : vector<8x128xf32> to vector<8x32xf32>
    %205 = arith.mulf %204, %185 : vector<8x32xf32>
    %206 = vector.extract_strided_slice %202 {offsets = [0, 0], sizes = [8, 32], strides = [1, 1]} : vector<8x128xf32> to vector<8x32xf32>
    %207 = vector.extract_strided_slice %203 {offsets = [0, 64], sizes = [8, 32], strides = [1, 1]} : vector<8x128xf32> to vector<8x32xf32>
    %208 = arith.mulf %206, %207 : vector<8x32xf32>
    %209 = arith.addf %205, %208 : vector<8x32xf32>
    %210 = vector.extract_strided_slice %202 {offsets = [0, 96], sizes = [8, 32], strides = [1, 1]} : vector<8x128xf32> to vector<8x32xf32>
    %211 = math.tanh %209 : vector<8x32xf32>
    %212 = arith.mulf %210, %211 : vector<8x32xf32>
    %213 = arith.index_cast %c7_i32 : i32 to index
    %c0_70 = arith.constant 0 : index
    %c0_71 = arith.constant 0 : index
    %214 = vector.load %arg6[%213, %c0_70, %c0_71] : memref<8x8x32xf32, #tpu.memory_space<vmem>>, vector<1x8x32xf32>
    %215 = vector.shape_cast %214 : vector<1x8x32xf32> to vector<8x32xf32>
    %216 = vector.shape_cast %212 : vector<8x32xf32> to vector<1x8x32xf32>
    tpu.vector_store %arg6[%213, %c0_70, %c0_71], %216 {strides = array<i32>} : memref<8x8x32xf32, #tpu.memory_space<vmem>>, vector<1x8x32xf32>,
    %c8_i32 = arith.constant 8 : i32
    %c0_72 = arith.constant 0 : index
    %c0_73 = arith.constant 0 : index
    %c0_74 = arith.constant 0 : index
    %217 = vector.load %arg5[%c0_72, %c0_73, %c0_74] : memref<4x8x32xf32, #tpu.memory_space<vmem>>, vector<1x8x32xf32>
    %218 = vector.shape_cast %217 : vector<1x8x32xf32> to vector<8x32xf32>
    %219 = vector.shape_cast %212 : vector<8x32xf32> to vector<1x8x32xf32>
    tpu.vector_store %arg5[%c0_72, %c0_73, %c0_74], %219 {strides = array<i32>} : memref<4x8x32xf32, #tpu.memory_space<vmem>>, vector<1x8x32xf32>,
    %c2_75 = arith.constant 2 : index
    %c0_76 = arith.constant 0 : index
    %c0_77 = arith.constant 0 : index
    %220 = vector.load %arg5[%c2_75, %c0_76, %c0_77] : memref<4x8x32xf32, #tpu.memory_space<vmem>>, vector<1x8x32xf32>
    %221 = vector.shape_cast %220 : vector<1x8x32xf32> to vector<8x32xf32>
    %222 = vector.shape_cast %209 : vector<8x32xf32> to vector<1x8x32xf32>
    tpu.vector_store %arg5[%c2_75, %c0_76, %c0_77], %222 {strides = array<i32>} : memref<4x8x32xf32, #tpu.memory_space<vmem>>, vector<1x8x32xf32>,
    %c96 = arith.constant 96 : index
    %c0_78 = arith.constant 0 : index
    %223 = vector.load %arg3[%c96, %c0_78] : memref<184x128xf32, #tpu.memory_space<vmem>>, vector<32x128xf32>
    %c0_79 = arith.constant 0 : index
    %c0_80 = arith.constant 0 : index
    %c0_81 = arith.constant 0 : index
    %224 = vector.load %arg6[%c0_79, %c0_80, %c0_81] : memref<8x8x32xf32, #tpu.memory_space<vmem>>, vector<8x8x32xf32>
    %225 = vector.shape_cast %224 : vector<8x8x32xf32> to vector<64x32xf32>
    %c32 = arith.constant 32 : index
    %c0_82 = arith.constant 0 : index
    %226 = vector.load %arg3[%c32, %c0_82] : memref<184x128xf32, #tpu.memory_space<vmem>>, vector<32x128xf32>
    %cst_83 = arith.constant dense<0.000000e+00> : vector<64x128xf32>
    %227 = tpu.matmul %225, %226, %cst_83 {dimension_numbers = #tpu.dot_dimension_numbers<[1], [0], [0], [1], [0, 0, 1, 1], [], []>} : vector<64x32xf32>, vector<32x128xf32>, vector<64x128xf32> -> vector<64x128xf32>
    %c178 = arith.constant 178 : index
    %c0_84 = arith.constant 0 : index
    %228 = vector.load %arg3[%c178, %c0_84] : memref<184x128xf32, #tpu.memory_space<vmem>>, vector<1x128xf32>
    %229 = vector.broadcast %228 : vector<1x128xf32> to vector<64x128xf32>
    %230 = arith.addf %227, %229 : vector<64x128xf32>
    %231 = vector.shape_cast %230 : vector<64x128xf32> to vector<8x8x128xf32>
    %c0_85 = arith.constant 0 : index
    %c0_86 = arith.constant 0 : index
    %c0_87 = arith.constant 0 : index
    %232 = vector.load %arg7[%c0_85, %c0_86, %c0_87] : memref<8x8x128xf32, #tpu.memory_space<vmem>>, vector<8x8x128xf32>
    tpu.vector_store %arg7[%c0_85, %c0_86, %c0_87], %231 {strides = array<i32>} : memref<8x8x128xf32, #tpu.memory_space<vmem>>, vector<8x8x128xf32>,
    %c1 = arith.constant 1 : index
    %c0_88 = arith.constant 0 : index
    %c0_89 = arith.constant 0 : index
    %233 = vector.load %arg2[%c1, %c0_88, %c0_89] : memref<4x8x32xf32, #tpu.memory_space<vmem>>, vector<1x8x32xf32>
    %234 = vector.shape_cast %233 : vector<1x8x32xf32> to vector<8x32xf32>
    %c3 = arith.constant 3 : index
    %c0_90 = arith.constant 0 : index
    %c0_91 = arith.constant 0 : index
    %235 = vector.load %arg2[%c3, %c0_90, %c0_91] : memref<4x8x32xf32, #tpu.memory_space<vmem>>, vector<1x8x32xf32>
    %236 = vector.shape_cast %235 : vector<1x8x32xf32> to vector<8x32xf32>
    %c0_i32_92 = arith.constant 0 : i32
    %237 = arith.index_cast %c0_i32_92 : i32 to index
    %c0_93 = arith.constant 0 : index
    %c0_94 = arith.constant 0 : index
    %238 = vector.load %arg7[%237, %c0_93, %c0_94] : memref<8x8x128xf32, #tpu.memory_space<vmem>>, vector<1x8x128xf32>
    %239 = vector.shape_cast %238 : vector<1x8x128xf32> to vector<8x128xf32>
    %cst_95 = arith.constant dense<0.000000e+00> : vector<8x128xf32>
    %240 = tpu.matmul %234, %223, %cst_95 {dimension_numbers = #tpu.dot_dimension_numbers<[1], [0], [0], [1], [0, 0, 1, 1], [], []>} : vector<8x32xf32>, vector<32x128xf32>, vector<8x128xf32> -> vector<8x128xf32>
    %241 = arith.addf %239, %240 : vector<8x128xf32>
    %242 = arith.negf %241 : vector<8x128xf32>
    %243 = math.exp %242 : vector<8x128xf32>
    %cst_96 = arith.constant 1.000000e+00 : f32
    %244 = vector.broadcast %cst_96 : f32 to vector<8x128xf32>
    %245 = arith.addf %244, %243 : vector<8x128xf32>
    %246 = arith.divf %244, %245 : vector<8x128xf32>
    %247 = math.tanh %241 : vector<8x128xf32>
    %248 = vector.extract_strided_slice %246 {offsets = [0, 32], sizes = [8, 32], strides = [1, 1]} : vector<8x128xf32> to vector<8x32xf32>
    %249 = arith.mulf %248, %236 : vector<8x32xf32>
    %250 = vector.extract_strided_slice %246 {offsets = [0, 0], sizes = [8, 32], strides = [1, 1]} : vector<8x128xf32> to vector<8x32xf32>
    %251 = vector.extract_strided_slice %247 {offsets = [0, 64], sizes = [8, 32], strides = [1, 1]} : vector<8x128xf32> to vector<8x32xf32>
    %252 = arith.mulf %250, %251 : vector<8x32xf32>
    %253 = arith.addf %249, %252 : vector<8x32xf32>
    %254 = vector.extract_strided_slice %246 {offsets = [0, 96], sizes = [8, 32], strides = [1, 1]} : vector<8x128xf32> to vector<8x32xf32>
    %255 = math.tanh %253 : vector<8x32xf32>
    %256 = arith.mulf %254, %255 : vector<8x32xf32>
    %257 = arith.index_cast %c0_i32_92 : i32 to index
    %c0_97 = arith.constant 0 : index
    %c0_98 = arith.constant 0 : index
    %258 = vector.load %arg6[%257, %c0_97, %c0_98] : memref<8x8x32xf32, #tpu.memory_space<vmem>>, vector<1x8x32xf32>
    %259 = vector.shape_cast %258 : vector<1x8x32xf32> to vector<8x32xf32>
    %260 = vector.shape_cast %256 : vector<8x32xf32> to vector<1x8x32xf32>
    tpu.vector_store %arg6[%257, %c0_97, %c0_98], %260 {strides = array<i32>} : memref<8x8x32xf32, #tpu.memory_space<vmem>>, vector<1x8x32xf32>,
    %c1_i32_99 = arith.constant 1 : i32
    %261 = arith.index_cast %c1_i32_99 : i32 to index
    %c0_100 = arith.constant 0 : index
    %c0_101 = arith.constant 0 : index
    %262 = vector.load %arg7[%261, %c0_100, %c0_101] : memref<8x8x128xf32, #tpu.memory_space<vmem>>, vector<1x8x128xf32>
    %263 = vector.shape_cast %262 : vector<1x8x128xf32> to vector<8x128xf32>
    %cst_102 = arith.constant dense<0.000000e+00> : vector<8x128xf32>
    %264 = tpu.matmul %256, %223, %cst_102 {dimension_numbers = #tpu.dot_dimension_numbers<[1], [0], [0], [1], [0, 0, 1, 1], [], []>} : vector<8x32xf32>, vector<32x128xf32>, vector<8x128xf32> -> vector<8x128xf32>
    %265 = arith.addf %263, %264 : vector<8x128xf32>
    %266 = arith.negf %265 : vector<8x128xf32>
    %267 = math.exp %266 : vector<8x128xf32>
    %cst_103 = arith.constant 1.000000e+00 : f32
    %268 = vector.broadcast %cst_103 : f32 to vector<8x128xf32>
    %269 = arith.addf %268, %267 : vector<8x128xf32>
    %270 = arith.divf %268, %269 : vector<8x128xf32>
    %271 = math.tanh %265 : vector<8x128xf32>
    %272 = vector.extract_strided_slice %270 {offsets = [0, 32], sizes = [8, 32], strides = [1, 1]} : vector<8x128xf32> to vector<8x32xf32>
    %273 = arith.mulf %272, %253 : vector<8x32xf32>
    %274 = vector.extract_strided_slice %270 {offsets = [0, 0], sizes = [8, 32], strides = [1, 1]} : vector<8x128xf32> to vector<8x32xf32>
    %275 = vector.extract_strided_slice %271 {offsets = [0, 64], sizes = [8, 32], strides = [1, 1]} : vector<8x128xf32> to vector<8x32xf32>
    %276 = arith.mulf %274, %275 : vector<8x32xf32>
    %277 = arith.addf %273, %276 : vector<8x32xf32>
    %278 = vector.extract_strided_slice %270 {offsets = [0, 96], sizes = [8, 32], strides = [1, 1]} : vector<8x128xf32> to vector<8x32xf32>
    %279 = math.tanh %277 : vector<8x32xf32>
    %280 = arith.mulf %278, %279 : vector<8x32xf32>
    %281 = arith.index_cast %c1_i32_99 : i32 to index
    %c0_104 = arith.constant 0 : index
    %c0_105 = arith.constant 0 : index
    %282 = vector.load %arg6[%281, %c0_104, %c0_105] : memref<8x8x32xf32, #tpu.memory_space<vmem>>, vector<1x8x32xf32>
    %283 = vector.shape_cast %282 : vector<1x8x32xf32> to vector<8x32xf32>
    %284 = vector.shape_cast %280 : vector<8x32xf32> to vector<1x8x32xf32>
    tpu.vector_store %arg6[%281, %c0_104, %c0_105], %284 {strides = array<i32>} : memref<8x8x32xf32, #tpu.memory_space<vmem>>, vector<1x8x32xf32>,
    %c2_i32_106 = arith.constant 2 : i32
    %285 = arith.index_cast %c2_i32_106 : i32 to index
    %c0_107 = arith.constant 0 : index
    %c0_108 = arith.constant 0 : index
    %286 = vector.load %arg7[%285, %c0_107, %c0_108] : memref<8x8x128xf32, #tpu.memory_space<vmem>>, vector<1x8x128xf32>
    %287 = vector.shape_cast %286 : vector<1x8x128xf32> to vector<8x128xf32>
    %cst_109 = arith.constant dense<0.000000e+00> : vector<8x128xf32>
    %288 = tpu.matmul %280, %223, %cst_109 {dimension_numbers = #tpu.dot_dimension_numbers<[1], [0], [0], [1], [0, 0, 1, 1], [], []>} : vector<8x32xf32>, vector<32x128xf32>, vector<8x128xf32> -> vector<8x128xf32>
    %289 = arith.addf %287, %288 : vector<8x128xf32>
    %290 = arith.negf %289 : vector<8x128xf32>
    %291 = math.exp %290 : vector<8x128xf32>
    %cst_110 = arith.constant 1.000000e+00 : f32
    %292 = vector.broadcast %cst_110 : f32 to vector<8x128xf32>
    %293 = arith.addf %292, %291 : vector<8x128xf32>
    %294 = arith.divf %292, %293 : vector<8x128xf32>
    %295 = math.tanh %289 : vector<8x128xf32>
    %296 = vector.extract_strided_slice %294 {offsets = [0, 32], sizes = [8, 32], strides = [1, 1]} : vector<8x128xf32> to vector<8x32xf32>
    %297 = arith.mulf %296, %277 : vector<8x32xf32>
    %298 = vector.extract_strided_slice %294 {offsets = [0, 0], sizes = [8, 32], strides = [1, 1]} : vector<8x128xf32> to vector<8x32xf32>
    %299 = vector.extract_strided_slice %295 {offsets = [0, 64], sizes = [8, 32], strides = [1, 1]} : vector<8x128xf32> to vector<8x32xf32>
    %300 = arith.mulf %298, %299 : vector<8x32xf32>
    %301 = arith.addf %297, %300 : vector<8x32xf32>
    %302 = vector.extract_strided_slice %294 {offsets = [0, 96], sizes = [8, 32], strides = [1, 1]} : vector<8x128xf32> to vector<8x32xf32>
    %303 = math.tanh %301 : vector<8x32xf32>
    %304 = arith.mulf %302, %303 : vector<8x32xf32>
    %305 = arith.index_cast %c2_i32_106 : i32 to index
    %c0_111 = arith.constant 0 : index
    %c0_112 = arith.constant 0 : index
    %306 = vector.load %arg6[%305, %c0_111, %c0_112] : memref<8x8x32xf32, #tpu.memory_space<vmem>>, vector<1x8x32xf32>
    %307 = vector.shape_cast %306 : vector<1x8x32xf32> to vector<8x32xf32>
    %308 = vector.shape_cast %304 : vector<8x32xf32> to vector<1x8x32xf32>
    tpu.vector_store %arg6[%305, %c0_111, %c0_112], %308 {strides = array<i32>} : memref<8x8x32xf32, #tpu.memory_space<vmem>>, vector<1x8x32xf32>,
    %c3_i32_113 = arith.constant 3 : i32
    %309 = arith.index_cast %c3_i32_113 : i32 to index
    %c0_114 = arith.constant 0 : index
    %c0_115 = arith.constant 0 : index
    %310 = vector.load %arg7[%309, %c0_114, %c0_115] : memref<8x8x128xf32, #tpu.memory_space<vmem>>, vector<1x8x128xf32>
    %311 = vector.shape_cast %310 : vector<1x8x128xf32> to vector<8x128xf32>
    %cst_116 = arith.constant dense<0.000000e+00> : vector<8x128xf32>
    %312 = tpu.matmul %304, %223, %cst_116 {dimension_numbers = #tpu.dot_dimension_numbers<[1], [0], [0], [1], [0, 0, 1, 1], [], []>} : vector<8x32xf32>, vector<32x128xf32>, vector<8x128xf32> -> vector<8x128xf32>
    %313 = arith.addf %311, %312 : vector<8x128xf32>
    %314 = arith.negf %313 : vector<8x128xf32>
    %315 = math.exp %314 : vector<8x128xf32>
    %cst_117 = arith.constant 1.000000e+00 : f32
    %316 = vector.broadcast %cst_117 : f32 to vector<8x128xf32>
    %317 = arith.addf %316, %315 : vector<8x128xf32>
    %318 = arith.divf %316, %317 : vector<8x128xf32>
    %319 = math.tanh %313 : vector<8x128xf32>
    %320 = vector.extract_strided_slice %318 {offsets = [0, 32], sizes = [8, 32], strides = [1, 1]} : vector<8x128xf32> to vector<8x32xf32>
    %321 = arith.mulf %320, %301 : vector<8x32xf32>
    %322 = vector.extract_strided_slice %318 {offsets = [0, 0], sizes = [8, 32], strides = [1, 1]} : vector<8x128xf32> to vector<8x32xf32>
    %323 = vector.extract_strided_slice %319 {offsets = [0, 64], sizes = [8, 32], strides = [1, 1]} : vector<8x128xf32> to vector<8x32xf32>
    %324 = arith.mulf %322, %323 : vector<8x32xf32>
    %325 = arith.addf %321, %324 : vector<8x32xf32>
    %326 = vector.extract_strided_slice %318 {offsets = [0, 96], sizes = [8, 32], strides = [1, 1]} : vector<8x128xf32> to vector<8x32xf32>
    %327 = math.tanh %325 : vector<8x32xf32>
    %328 = arith.mulf %326, %327 : vector<8x32xf32>
    %329 = arith.index_cast %c3_i32_113 : i32 to index
    %c0_118 = arith.constant 0 : index
    %c0_119 = arith.constant 0 : index
    %330 = vector.load %arg6[%329, %c0_118, %c0_119] : memref<8x8x32xf32, #tpu.memory_space<vmem>>, vector<1x8x32xf32>
    %331 = vector.shape_cast %330 : vector<1x8x32xf32> to vector<8x32xf32>
    %332 = vector.shape_cast %328 : vector<8x32xf32> to vector<1x8x32xf32>
    tpu.vector_store %arg6[%329, %c0_118, %c0_119], %332 {strides = array<i32>} : memref<8x8x32xf32, #tpu.memory_space<vmem>>, vector<1x8x32xf32>,
    %c4_i32_120 = arith.constant 4 : i32
    %333 = arith.index_cast %c4_i32_120 : i32 to index
    %c0_121 = arith.constant 0 : index
    %c0_122 = arith.constant 0 : index
    %334 = vector.load %arg7[%333, %c0_121, %c0_122] : memref<8x8x128xf32, #tpu.memory_space<vmem>>, vector<1x8x128xf32>
    %335 = vector.shape_cast %334 : vector<1x8x128xf32> to vector<8x128xf32>
    %cst_123 = arith.constant dense<0.000000e+00> : vector<8x128xf32>
    %336 = tpu.matmul %328, %223, %cst_123 {dimension_numbers = #tpu.dot_dimension_numbers<[1], [0], [0], [1], [0, 0, 1, 1], [], []>} : vector<8x32xf32>, vector<32x128xf32>, vector<8x128xf32> -> vector<8x128xf32>
    %337 = arith.addf %335, %336 : vector<8x128xf32>
    %338 = arith.negf %337 : vector<8x128xf32>
    %339 = math.exp %338 : vector<8x128xf32>
    %cst_124 = arith.constant 1.000000e+00 : f32
    %340 = vector.broadcast %cst_124 : f32 to vector<8x128xf32>
    %341 = arith.addf %340, %339 : vector<8x128xf32>
    %342 = arith.divf %340, %341 : vector<8x128xf32>
    %343 = math.tanh %337 : vector<8x128xf32>
    %344 = vector.extract_strided_slice %342 {offsets = [0, 32], sizes = [8, 32], strides = [1, 1]} : vector<8x128xf32> to vector<8x32xf32>
    %345 = arith.mulf %344, %325 : vector<8x32xf32>
    %346 = vector.extract_strided_slice %342 {offsets = [0, 0], sizes = [8, 32], strides = [1, 1]} : vector<8x128xf32> to vector<8x32xf32>
    %347 = vector.extract_strided_slice %343 {offsets = [0, 64], sizes = [8, 32], strides = [1, 1]} : vector<8x128xf32> to vector<8x32xf32>
    %348 = arith.mulf %346, %347 : vector<8x32xf32>
    %349 = arith.addf %345, %348 : vector<8x32xf32>
    %350 = vector.extract_strided_slice %342 {offsets = [0, 96], sizes = [8, 32], strides = [1, 1]} : vector<8x128xf32> to vector<8x32xf32>
    %351 = math.tanh %349 : vector<8x32xf32>
    %352 = arith.mulf %350, %351 : vector<8x32xf32>
    %353 = arith.index_cast %c4_i32_120 : i32 to index
    %c0_125 = arith.constant 0 : index
    %c0_126 = arith.constant 0 : index
    %354 = vector.load %arg6[%353, %c0_125, %c0_126] : memref<8x8x32xf32, #tpu.memory_space<vmem>>, vector<1x8x32xf32>
    %355 = vector.shape_cast %354 : vector<1x8x32xf32> to vector<8x32xf32>
    %356 = vector.shape_cast %352 : vector<8x32xf32> to vector<1x8x32xf32>
    tpu.vector_store %arg6[%353, %c0_125, %c0_126], %356 {strides = array<i32>} : memref<8x8x32xf32, #tpu.memory_space<vmem>>, vector<1x8x32xf32>,
    %c5_i32_127 = arith.constant 5 : i32
    %357 = arith.index_cast %c5_i32_127 : i32 to index
    %c0_128 = arith.constant 0 : index
    %c0_129 = arith.constant 0 : index
    %358 = vector.load %arg7[%357, %c0_128, %c0_129] : memref<8x8x128xf32, #tpu.memory_space<vmem>>, vector<1x8x128xf32>
    %359 = vector.shape_cast %358 : vector<1x8x128xf32> to vector<8x128xf32>
    %cst_130 = arith.constant dense<0.000000e+00> : vector<8x128xf32>
    %360 = tpu.matmul %352, %223, %cst_130 {dimension_numbers = #tpu.dot_dimension_numbers<[1], [0], [0], [1], [0, 0, 1, 1], [], []>} : vector<8x32xf32>, vector<32x128xf32>, vector<8x128xf32> -> vector<8x128xf32>
    %361 = arith.addf %359, %360 : vector<8x128xf32>
    %362 = arith.negf %361 : vector<8x128xf32>
    %363 = math.exp %362 : vector<8x128xf32>
    %cst_131 = arith.constant 1.000000e+00 : f32
    %364 = vector.broadcast %cst_131 : f32 to vector<8x128xf32>
    %365 = arith.addf %364, %363 : vector<8x128xf32>
    %366 = arith.divf %364, %365 : vector<8x128xf32>
    %367 = math.tanh %361 : vector<8x128xf32>
    %368 = vector.extract_strided_slice %366 {offsets = [0, 32], sizes = [8, 32], strides = [1, 1]} : vector<8x128xf32> to vector<8x32xf32>
    %369 = arith.mulf %368, %349 : vector<8x32xf32>
    %370 = vector.extract_strided_slice %366 {offsets = [0, 0], sizes = [8, 32], strides = [1, 1]} : vector<8x128xf32> to vector<8x32xf32>
    %371 = vector.extract_strided_slice %367 {offsets = [0, 64], sizes = [8, 32], strides = [1, 1]} : vector<8x128xf32> to vector<8x32xf32>
    %372 = arith.mulf %370, %371 : vector<8x32xf32>
    %373 = arith.addf %369, %372 : vector<8x32xf32>
    %374 = vector.extract_strided_slice %366 {offsets = [0, 96], sizes = [8, 32], strides = [1, 1]} : vector<8x128xf32> to vector<8x32xf32>
    %375 = math.tanh %373 : vector<8x32xf32>
    %376 = arith.mulf %374, %375 : vector<8x32xf32>
    %377 = arith.index_cast %c5_i32_127 : i32 to index
    %c0_132 = arith.constant 0 : index
    %c0_133 = arith.constant 0 : index
    %378 = vector.load %arg6[%377, %c0_132, %c0_133] : memref<8x8x32xf32, #tpu.memory_space<vmem>>, vector<1x8x32xf32>
    %379 = vector.shape_cast %378 : vector<1x8x32xf32> to vector<8x32xf32>
    %380 = vector.shape_cast %376 : vector<8x32xf32> to vector<1x8x32xf32>
    tpu.vector_store %arg6[%377, %c0_132, %c0_133], %380 {strides = array<i32>} : memref<8x8x32xf32, #tpu.memory_space<vmem>>, vector<1x8x32xf32>,
    %c6_i32_134 = arith.constant 6 : i32
    %381 = arith.index_cast %c6_i32_134 : i32 to index
    %c0_135 = arith.constant 0 : index
    %c0_136 = arith.constant 0 : index
    %382 = vector.load %arg7[%381, %c0_135, %c0_136] : memref<8x8x128xf32, #tpu.memory_space<vmem>>, vector<1x8x128xf32>
    %383 = vector.shape_cast %382 : vector<1x8x128xf32> to vector<8x128xf32>
    %cst_137 = arith.constant dense<0.000000e+00> : vector<8x128xf32>
    %384 = tpu.matmul %376, %223, %cst_137 {dimension_numbers = #tpu.dot_dimension_numbers<[1], [0], [0], [1], [0, 0, 1, 1], [], []>} : vector<8x32xf32>, vector<32x128xf32>, vector<8x128xf32> -> vector<8x128xf32>
    %385 = arith.addf %383, %384 : vector<8x128xf32>
    %386 = arith.negf %385 : vector<8x128xf32>
    %387 = math.exp %386 : vector<8x128xf32>
    %cst_138 = arith.constant 1.000000e+00 : f32
    %388 = vector.broadcast %cst_138 : f32 to vector<8x128xf32>
    %389 = arith.addf %388, %387 : vector<8x128xf32>
    %390 = arith.divf %388, %389 : vector<8x128xf32>
    %391 = math.tanh %385 : vector<8x128xf32>
    %392 = vector.extract_strided_slice %390 {offsets = [0, 32], sizes = [8, 32], strides = [1, 1]} : vector<8x128xf32> to vector<8x32xf32>
    %393 = arith.mulf %392, %373 : vector<8x32xf32>
    %394 = vector.extract_strided_slice %390 {offsets = [0, 0], sizes = [8, 32], strides = [1, 1]} : vector<8x128xf32> to vector<8x32xf32>
    %395 = vector.extract_strided_slice %391 {offsets = [0, 64], sizes = [8, 32], strides = [1, 1]} : vector<8x128xf32> to vector<8x32xf32>
    %396 = arith.mulf %394, %395 : vector<8x32xf32>
    %397 = arith.addf %393, %396 : vector<8x32xf32>
    %398 = vector.extract_strided_slice %390 {offsets = [0, 96], sizes = [8, 32], strides = [1, 1]} : vector<8x128xf32> to vector<8x32xf32>
    %399 = math.tanh %397 : vector<8x32xf32>
    %400 = arith.mulf %398, %399 : vector<8x32xf32>
    %401 = arith.index_cast %c6_i32_134 : i32 to index
    %c0_139 = arith.constant 0 : index
    %c0_140 = arith.constant 0 : index
    %402 = vector.load %arg6[%401, %c0_139, %c0_140] : memref<8x8x32xf32, #tpu.memory_space<vmem>>, vector<1x8x32xf32>
    %403 = vector.shape_cast %402 : vector<1x8x32xf32> to vector<8x32xf32>
    %404 = vector.shape_cast %400 : vector<8x32xf32> to vector<1x8x32xf32>
    tpu.vector_store %arg6[%401, %c0_139, %c0_140], %404 {strides = array<i32>} : memref<8x8x32xf32, #tpu.memory_space<vmem>>, vector<1x8x32xf32>,
    %c7_i32_141 = arith.constant 7 : i32
    %405 = arith.index_cast %c7_i32_141 : i32 to index
    %c0_142 = arith.constant 0 : index
    %c0_143 = arith.constant 0 : index
    %406 = vector.load %arg7[%405, %c0_142, %c0_143] : memref<8x8x128xf32, #tpu.memory_space<vmem>>, vector<1x8x128xf32>
    %407 = vector.shape_cast %406 : vector<1x8x128xf32> to vector<8x128xf32>
    %cst_144 = arith.constant dense<0.000000e+00> : vector<8x128xf32>
    %408 = tpu.matmul %400, %223, %cst_144 {dimension_numbers = #tpu.dot_dimension_numbers<[1], [0], [0], [1], [0, 0, 1, 1], [], []>} : vector<8x32xf32>, vector<32x128xf32>, vector<8x128xf32> -> vector<8x128xf32>
    %409 = arith.addf %407, %408 : vector<8x128xf32>
    %410 = arith.negf %409 : vector<8x128xf32>
    %411 = math.exp %410 : vector<8x128xf32>
    %cst_145 = arith.constant 1.000000e+00 : f32
    %412 = vector.broadcast %cst_145 : f32 to vector<8x128xf32>
    %413 = arith.addf %412, %411 : vector<8x128xf32>
    %414 = arith.divf %412, %413 : vector<8x128xf32>
    %415 = math.tanh %409 : vector<8x128xf32>
    %416 = vector.extract_strided_slice %414 {offsets = [0, 32], sizes = [8, 32], strides = [1, 1]} : vector<8x128xf32> to vector<8x32xf32>
    %417 = arith.mulf %416, %397 : vector<8x32xf32>
    %418 = vector.extract_strided_slice %414 {offsets = [0, 0], sizes = [8, 32], strides = [1, 1]} : vector<8x128xf32> to vector<8x32xf32>
    %419 = vector.extract_strided_slice %415 {offsets = [0, 64], sizes = [8, 32], strides = [1, 1]} : vector<8x128xf32> to vector<8x32xf32>
    %420 = arith.mulf %418, %419 : vector<8x32xf32>
    %421 = arith.addf %417, %420 : vector<8x32xf32>
    %422 = vector.extract_strided_slice %414 {offsets = [0, 96], sizes = [8, 32], strides = [1, 1]} : vector<8x128xf32> to vector<8x32xf32>
    %423 = math.tanh %421 : vector<8x32xf32>
    %424 = arith.mulf %422, %423 : vector<8x32xf32>
    %425 = arith.index_cast %c7_i32_141 : i32 to index
    %c0_146 = arith.constant 0 : index
    %c0_147 = arith.constant 0 : index
    %426 = vector.load %arg6[%425, %c0_146, %c0_147] : memref<8x8x32xf32, #tpu.memory_space<vmem>>, vector<1x8x32xf32>
    %427 = vector.shape_cast %426 : vector<1x8x32xf32> to vector<8x32xf32>
    %428 = vector.shape_cast %424 : vector<8x32xf32> to vector<1x8x32xf32>
    tpu.vector_store %arg6[%425, %c0_146, %c0_147], %428 {strides = array<i32>} : memref<8x8x32xf32, #tpu.memory_space<vmem>>, vector<1x8x32xf32>,
    %c8_i32_148 = arith.constant 8 : i32
    %c1_149 = arith.constant 1 : index
    %c0_150 = arith.constant 0 : index
    %c0_151 = arith.constant 0 : index
    %429 = vector.load %arg5[%c1_149, %c0_150, %c0_151] : memref<4x8x32xf32, #tpu.memory_space<vmem>>, vector<1x8x32xf32>
    %430 = vector.shape_cast %429 : vector<1x8x32xf32> to vector<8x32xf32>
    %431 = vector.shape_cast %424 : vector<8x32xf32> to vector<1x8x32xf32>
    tpu.vector_store %arg5[%c1_149, %c0_150, %c0_151], %431 {strides = array<i32>} : memref<4x8x32xf32, #tpu.memory_space<vmem>>, vector<1x8x32xf32>,
    %c3_152 = arith.constant 3 : index
    %c0_153 = arith.constant 0 : index
    %c0_154 = arith.constant 0 : index
    %432 = vector.load %arg5[%c3_152, %c0_153, %c0_154] : memref<4x8x32xf32, #tpu.memory_space<vmem>>, vector<1x8x32xf32>
    %433 = vector.shape_cast %432 : vector<1x8x32xf32> to vector<8x32xf32>
    %434 = vector.shape_cast %421 : vector<8x32xf32> to vector<1x8x32xf32>
    tpu.vector_store %arg5[%c3_152, %c0_153, %c0_154], %434 {strides = array<i32>} : memref<4x8x32xf32, #tpu.memory_space<vmem>>, vector<1x8x32xf32>,
    %c7 = arith.constant 7 : index
    %c0_155 = arith.constant 0 : index
    %c0_156 = arith.constant 0 : index
    %435 = vector.load %arg6[%c7, %c0_155, %c0_156] : memref<8x8x32xf32, #tpu.memory_space<vmem>>, vector<1x8x32xf32>
    %436 = vector.shape_cast %435 : vector<1x8x32xf32> to vector<8x32xf32>
    %c144 = arith.constant 144 : index
    %c0_157 = arith.constant 0 : index
    %437 = vector.load %arg3[%c144, %c0_157] : memref<184x128xf32, #tpu.memory_space<vmem>>, vector<32x128xf32>
    %cst_158 = arith.constant dense<0.000000e+00> : vector<8x128xf32>
    %438 = tpu.matmul %436, %437, %cst_158 {dimension_numbers = #tpu.dot_dimension_numbers<[1], [0], [0], [1], [0, 0, 1, 1], [], []>} : vector<8x32xf32>, vector<32x128xf32>, vector<8x128xf32> -> vector<8x128xf32>
    %c179 = arith.constant 179 : index
    %c0_159 = arith.constant 0 : index
    %439 = vector.load %arg3[%c179, %c0_159] : memref<184x128xf32, #tpu.memory_space<vmem>>, vector<1x128xf32>
    %440 = vector.broadcast %439 : vector<1x128xf32> to vector<8x128xf32>
    %441 = arith.addf %438, %440 : vector<8x128xf32>
    %c0_160 = arith.constant 0 : index
    %c0_161 = arith.constant 0 : index
    %442 = vector.load %arg4[%c0_160, %c0_161] : memref<8x128xf32, #tpu.memory_space<vmem>>, vector<8x128xf32>
    tpu.vector_store %arg4[%c0_160, %c0_161], %441 {strides = array<i32>} : memref<8x128xf32, #tpu.memory_space<vmem>>, vector<8x128xf32>,
    return
  }
  func.func @transform_0(%arg0: i32) -> (i32, i32, i32) {
    %c0_i32 = arith.constant 0 : i32
    %c0_i32_0 = arith.constant 0 : i32
    %c0_i32_1 = arith.constant 0 : i32
    return %c0_i32, %arg0, %c0_i32_0 : i32, i32, i32
  }
  func.func @transform_1(%arg0: i32) -> (i32, i32, i32) {
    %c0_i32 = arith.constant 0 : i32
    %c0_i32_0 = arith.constant 0 : i32
    %c0_i32_1 = arith.constant 0 : i32
    return %c0_i32, %arg0, %c0_i32_0 : i32, i32, i32
  }
  func.func @transform_2(%arg0: i32) -> (i32, i32) {
    %c0_i32 = arith.constant 0 : i32
    %c0_i32_0 = arith.constant 0 : i32
    %c0_i32_1 = arith.constant 0 : i32
    return %c0_i32, %c0_i32_0 : i32, i32
  }
  func.func @transform_3(%arg0: i32) -> (i32, i32) {
    %c0_i32 = arith.constant 0 : i32
    %c0_i32_0 = arith.constant 0 : i32
    return %arg0, %c0_i32 : i32, i32
  }
  func.func @transform_4(%arg0: i32) -> (i32, i32, i32) {
    %c0_i32 = arith.constant 0 : i32
    %c0_i32_0 = arith.constant 0 : i32
    %c0_i32_1 = arith.constant 0 : i32
    return %c0_i32, %arg0, %c0_i32_0 : i32, i32, i32
  }
}

</mosaic_0001>

<llo_original>
// kernel: tpu_custom_call.1
$region0: #{tpu_custom_call.1}
  #allocation0 [shape = 'u32[]', space=smem, size = 0x4, offset = 0x4, fixed_abs, tag = 'smem constant byte address 0x4 - core index']
  #allocation1 [shape = 'u32[72,128]{1,0:T(1,128)}', space=vmem, size = 0x9000, scoped, tag = 'internal scratch']
  #allocation2 [shape = 'f32[8,8,32]{2,1,0:T(8,128)}', space=vmem, size = 0x8000, scoped, tag = 'scratch operand']
  #allocation3 [shape = 'f32[8,8,128]{2,1,0:T(8,128)}', space=vmem, size = 0x8000, scoped, tag = 'scratch operand']
  %s0 = inlined_call_operand.hbm [shape: f32[8,8,16], index: 0, kind: input, shape index: {}]
  %s1 = inlined_call_operand.hbm [shape: f32[4,8,32], index: 1, kind: input, shape index: {}]
  %s2 = inlined_call_operand.hbm [shape: f32[184,128], index: 2, kind: input, shape index: {}]
  %s3 = inlined_call_operand.hbm [shape: f32[8,128], index: 3, kind: output, shape index: {0}]
  %s4 = inlined_call_operand.hbm [shape: f32[4,8,32], index: 4, kind: output, shape index: {1}]
  %5 = xla_tuple %s3, %s4
  %s6 = sld [smem:[#allocation0]]
  $region42: #{tpu_custom_call.1} parent=0
    _
  %s8 = ssub.s32 1, %s6
  %s9 = scalar_select 0, %s8, %s6
  $region1: #{tpu_custom_call.1} parent=0
    #allocation4 [shape = 'u8[32768]{0}', space=vmem, size = 0x8000, scoped, tag = 'input window, operand 0, single buffered']
    #allocation5 [shape = 's32[1]{0}', space=sflag, size = 0x4, scoped, tag = 'scoped memory for tpu_custom_call.1']
    #allocation6 [shape = 's32[1]{0}', space=sflag, size = 0x4, scoped, tag = 'scoped memory for tpu_custom_call.1']
    #allocation7 [shape = 'u8[16384]{0}', space=vmem, size = 0x4000, scoped, tag = 'input window, operand 1, single buffered']
    #allocation8 [shape = 's32[1]{0}', space=sflag, size = 0x4, scoped, tag = 'scoped memory for tpu_custom_call.1']
    #allocation9 [shape = 'u8[94208]{0}', space=vmem, size = 0x17000, scoped, tag = 'input window, operand 2, single buffered']
    #allocation10 [shape = 'u8[4096]{0}', space=vmem, size = 0x1000, scoped, tag = 'output window, operand 0, single buffered']
    #allocation11 [shape = 'u8[16384]{0}', space=vmem, size = 0x4000, scoped, tag = 'output window, operand 1, single buffered']
    #allocation12 [shape = 's32[1]{0}', space=sflag, size = 0x4, scoped, tag = 'scoped memory for tpu_custom_call.1']
    %10 = vsyncpa [#allocation5], 0
    %11 = vsyncpa [#allocation8], 0
    %12 = vsyncpa [#allocation6], 0
    %13 = vsyncpa [#allocation12], 0
    // Predicated region
    $region2: #{tpu_custom_call.1} parent=1 // pred_check
      _
    $region3: #{tpu_custom_call.1} parent=1 // pred_check_branch
      %15 = sbr.rel (0) target = $region5
    $region4: #{tpu_custom_call.1} parent=1 // pred_region
      %17 = vsyncadd [#allocation5], 0
      %s18 = sshll.u32 %s0, 4
      %s19 = int_to_ptr.hbm [resolvable:$true] %s18
      %s20 = sshll.u32 [#allocation4], 4
      %s21 = int_to_ptr.vmem [resolvable:$true] %s20
      %26 = dma.hbm_to_vmem [thread:$0]  %s19, 1024, %s21, [#allocation5], 128, 128, 8
    $region5: #{tpu_custom_call.1} parent=1 // pred_fallthru
      _
    // Predicated region
    $region6: #{tpu_custom_call.1} parent=1 // pred_check
      _
    $region7: #{tpu_custom_call.1} parent=1 // pred_check_branch
      %28 = sbr.rel (0) target = $region9
    $region8: #{tpu_custom_call.1} parent=1 // pred_region
      %30 = vsyncadd [#allocation8], 0
      %s31 = sshll.u32 %s1, 4
      %s32 = int_to_ptr.hbm [resolvable:$true] %s31
      %s33 = sshll.u32 [#allocation7], 4
      %s34 = int_to_ptr.vmem [resolvable:$true] %s33
      %39 = dma.hbm_to_vmem [thread:$0]  %s32, 512, %s34, [#allocation8], 128, 128, 8
    $region9: #{tpu_custom_call.1} parent=1 // pred_fallthru
      _
    // Predicated region
    $region10: #{tpu_custom_call.1} parent=1 // pred_check
      _
    $region11: #{tpu_custom_call.1} parent=1 // pred_check_branch
      %41 = sbr.rel (0) target = $region13
    $region12: #{tpu_custom_call.1} parent=1 // pred_region
      %43 = vsyncadd [#allocation8], 0
      %s44 = sshll.u32 %s2, 4
      %s45 = int_to_ptr.hbm [resolvable:$true] %s44
      %s46 = sshll.u32 [#allocation9], 4
      %s47 = int_to_ptr.vmem [resolvable:$true] %s46
      %52 = dma.hbm_to_vmem [thread:$0]  %s45, 2944, %s47, [#allocation8], 128, 128, 8
    $region13: #{tpu_custom_call.1} parent=1 // pred_fallthru
      _
    // Predicated region
    $region14: #{tpu_custom_call.1} parent=1 // pred_check
      _
    $region15: #{tpu_custom_call.1} parent=1 // pred_check_branch
      %54 = sbr.rel (0) target = $region17
    $region16: #{tpu_custom_call.1} parent=1 // pred_region
      %56 = dma.done [#allocation5], 1024
    $region17: #{tpu_custom_call.1} parent=1 // pred_fallthru
      _
    // Predicated region
    $region18: #{tpu_custom_call.1} parent=1 // pred_check
      _
    $region19: #{tpu_custom_call.1} parent=1 // pred_check_branch
      %58 = sbr.rel (0) target = $region21
    $region20: #{tpu_custom_call.1} parent=1 // pred_region
      %60 = dma.done [#allocation8], 512
    $region21: #{tpu_custom_call.1} parent=1 // pred_fallthru
      _
    // Predicated region
    $region22: #{tpu_custom_call.1} parent=1 // pred_check
      _
    $region23: #{tpu_custom_call.1} parent=1 // pred_check_branch
      %62 = sbr.rel (0) target = $region25
    $region24: #{tpu_custom_call.1} parent=1 // pred_region
      %64 = dma.done [#allocation8], 2944
    $region25: #{tpu_custom_call.1} parent=1 // pred_fallthru
      _
    %v65 = vld [vmem:[#allocation4] sm:$0xff]
    %v66 = vld [vmem:[#allocation4 + $0x8] sm:$0xff]
    %v67 = vld [vmem:[#allocation4 + $0x10] sm:$0xff]
    %v68 = vld [vmem:[#allocation4 + $0x18] sm:$0xff]
    %v69 = vld [vmem:[#allocation4 + $0x20] sm:$0xff]
    %v70 = vld [vmem:[#allocation4 + $0x28] sm:$0xff]
    %v71 = vld [vmem:[#allocation4 + $0x30] sm:$0xff]
    %v72 = vld [vmem:[#allocation4 + $0x38] sm:$0xff]
    %v73 = vld [vmem:[#allocation9 + $0x80] sm:$0xff]
    %v74 = vld [vmem:[#allocation9 + $0x88] sm:$0xff]
    %v75 = vld [vmem:[#allocation9 + $0xb0] sm:$0x1]
    %v76 = vperm.slane %v75, 0
    %vm77 = vcmask 130048
    %v79 = vsel %vm77, %v65, 0
    %v82 = vsel %vm77, %v66, 0
    %v85 = vsel %vm77, %v67, 0
    %v88 = vsel %vm77, %v68, 0
    %v91 = vsel %vm77, %v69, 0
    %v94 = vsel %vm77, %v70, 0
    %v97 = vsel %vm77, %v71, 0
    %v100 = vsel %vm77, %v72, 0
    %102 = vmatpush.msra.mxu0 0.0
    %103 = vmatpush.msra.mxu0 0.0
    %104 = vmatpush.msra.mxu0 0.0
    %105 = vmatpush.msra.mxu0 0.0
    %106 = vmatpush.msra.mxu0 0.0
    %107 = vmatpush.msra.mxu0 0.0
    %108 = vmatpush.msra.mxu0 0.0
    %109 = vmatpush.msra.mxu0 0.0
    %110 = vmatpush.msra.mxu0 0.0
    %111 = vmatpush.msra.mxu0 0.0
    %112 = vmatpush.msra.mxu0 0.0
    %113 = vmatpush.msra.mxu0 0.0
    %114 = vmatpush.msra.mxu0 0.0
    %115 = vmatpush.msra.mxu0 0.0
    %116 = vmatpush.msra.mxu0 %v74
    %117 = vmatpush.msra.mxu0 %v73
    %118 = vmatmul.f32.gmra.mxu0 %v79
    %v119 = vpop.f32.mrf.mxu0
    %v120 = vadd.f32 %v76, %v119
    %121 = vmatmul.f32.gmra.mxu0 %v82
    %v122 = vpop.f32.mrf.mxu0
    %v123 = vadd.f32 %v76, %v122
    %124 = vmatmul.f32.gmra.mxu0 %v85
    %v125 = vpop.f32.mrf.mxu0
    %v126 = vadd.f32 %v76, %v125
    %127 = vmatmul.f32.gmra.mxu0 %v88
    %v128 = vpop.f32.mrf.mxu0
    %v129 = vadd.f32 %v76, %v128
    %130 = vmatmul.f32.gmra.mxu0 %v91
    %v131 = vpop.f32.mrf.mxu0
    %v132 = vadd.f32 %v76, %v131
    %133 = vmatmul.f32.gmra.mxu0 %v94
    %v134 = vpop.f32.mrf.mxu0
    %v135 = vadd.f32 %v76, %v134
    %136 = vmatmul.f32.gmra.mxu0 %v97
    %v137 = vpop.f32.mrf.mxu0
    %v138 = vadd.f32 %v76, %v137
    %139 = vmatmul.f32.gmra.mxu0 %v100
    %v140 = vpop.f32.mrf.mxu0
    %v141 = vadd.f32 %v76, %v140
    %142 = vdwg.mxu0
    %v143 = vmax.f32 %v120, 0.0
    %v144 = vmax.f32 %v123, 0.0
    %v145 = vmax.f32 %v126, 0.0
    %v146 = vmax.f32 %v129, 0.0
    %v147 = vmax.f32 %v132, 0.0
    %v148 = vmax.f32 %v135, 0.0
    %v149 = vmax.f32 %v138, 0.0
    %v150 = vmax.f32 %v141, 0.0
    %vm151 = vcmask 261120
    %152 = vst.msk [vmem:[#allocation2] sm:$0xff] %vm151, %v143
    %153 = vst.msk [vmem:[#allocation2 + $0x8] sm:$0xff] %vm151, %v144
    %154 = vst.msk [vmem:[#allocation2 + $0x10] sm:$0xff] %vm151, %v145
    %155 = vst.msk [vmem:[#allocation2 + $0x18] sm:$0xff] %vm151, %v146
    %156 = vst.msk [vmem:[#allocation2 + $0x20] sm:$0xff] %vm151, %v147
    %157 = vst.msk [vmem:[#allocation2 + $0x28] sm:$0xff] %vm151, %v148
    %158 = vst.msk [vmem:[#allocation2 + $0x30] sm:$0xff] %vm151, %v149
    %159 = vst.msk [vmem:[#allocation2 + $0x38] sm:$0xff] %vm151, %v150
    %v160 = vld [vmem:[#allocation9 + $0x40] sm:$0xff]
    %v161 = vld [vmem:[#allocation9 + $0x48] sm:$0xff]
    %v162 = vld [vmem:[#allocation9 + $0x50] sm:$0xff]
    %v163 = vld [vmem:[#allocation9 + $0x58] sm:$0xff]
    %v164 = vld [vmem:[#allocation2] sm:$0xff]
    %v165 = vld [vmem:[#allocation2 + $0x8] sm:$0xff]
    %v166 = vld [vmem:[#allocation2 + $0x10] sm:$0xff]
    %v167 = vld [vmem:[#allocation2 + $0x18] sm:$0xff]
    %v168 = vld [vmem:[#allocation2 + $0x20] sm:$0xff]
    %v169 = vld [vmem:[#allocation2 + $0x28] sm:$0xff]
    %v170 = vld [vmem:[#allocation2 + $0x30] sm:$0xff]
    %v171 = vld [vmem:[#allocation2 + $0x38] sm:$0xff]
    %v172 = vld [vmem:[#allocation9] sm:$0xff]
    %v173 = vld [vmem:[#allocation9 + $0x8] sm:$0xff]
    %v174 = vld [vmem:[#allocation9 + $0x10] sm:$0xff]
    %v175 = vld [vmem:[#allocation9 + $0x18] sm:$0xff]
    %v176 = vld [vmem:[#allocation9 + $0xb1] sm:$0x1]
    %v177 = vperm.slane %v176, 0
    %v179 = vsel %vm151, %v164, 0
    %v182 = vsel %vm151, %v165, 0
    %v185 = vsel %vm151, %v166, 0
    %v188 = vsel %vm151, %v167, 0
    %v191 = vsel %vm151, %v168, 0
    %v194 = vsel %vm151, %v169, 0
    %v197 = vsel %vm151, %v170, 0
    %v200 = vsel %vm151, %v171, 0
    %202 = vmatpush.msra.mxu0 0.0
    %203 = vmatpush.msra.mxu0 0.0
    %204 = vmatpush.msra.mxu0 0.0
    %205 = vmatpush.msra.mxu0 0.0
    %206 = vmatpush.msra.mxu0 0.0
    %207 = vmatpush.msra.mxu0 0.0
    %208 = vmatpush.msra.mxu0 0.0
    %209 = vmatpush.msra.mxu0 0.0
    %210 = vmatpush.msra.mxu0 0.0
    %211 = vmatpush.msra.mxu0 0.0
    %212 = vmatpush.msra.mxu0 0.0
    %213 = vmatpush.msra.mxu0 0.0
    %214 = vmatpush.msra.mxu0 %v175
    %215 = vmatpush.msra.mxu0 %v174
    %216 = vmatpush.msra.mxu0 %v173
    %217 = vmatpush.msra.mxu0 %v172
    %218 = vmatmul.f32.gmra.mxu0 %v179
    %v219 = vpop.f32.mrf.mxu0
    %v220 = vadd.f32 %v177, %v219
    %221 = vmatmul.f32.gmra.mxu0 %v182
    %v222 = vpop.f32.mrf.mxu0
    %v223 = vadd.f32 %v177, %v222
    %224 = vmatmul.f32.gmra.mxu0 %v185
    %v225 = vpop.f32.mrf.mxu0
    %v226 = vadd.f32 %v177, %v225
    %227 = vmatmul.f32.gmra.mxu0 %v188
    %v228 = vpop.f32.mrf.mxu0
    %v229 = vadd.f32 %v177, %v228
    %230 = vmatmul.f32.gmra.mxu0 %v191
    %v231 = vpop.f32.mrf.mxu0
    %v232 = vadd.f32 %v177, %v231
    %233 = vmatmul.f32.gmra.mxu0 %v194
    %v234 = vpop.f32.mrf.mxu0
    %v235 = vadd.f32 %v177, %v234
    %236 = vmatmul.f32.gmra.mxu0 %v197
    %v237 = vpop.f32.mrf.mxu0
    %v238 = vadd.f32 %v177, %v237
    %239 = vmatmul.f32.gmra.mxu0 %v200
    %v240 = vpop.f32.mrf.mxu0
    %v241 = vadd.f32 %v177, %v240
    %242 = vdwg.mxu0
    %243 = vst [vmem:[#allocation3] sm:$0xff] %v220
    %244 = vst [vmem:[#allocation3 + $0x8] sm:$0xff] %v223
    %245 = vst [vmem:[#allocation3 + $0x10] sm:$0xff] %v226
    %246 = vst [vmem:[#allocation3 + $0x18] sm:$0xff] %v229
    %247 = vst [vmem:[#allocation3 + $0x20] sm:$0xff] %v232
    %248 = vst [vmem:[#allocation3 + $0x28] sm:$0xff] %v235
    %249 = vst [vmem:[#allocation3 + $0x30] sm:$0xff] %v238
    %250 = vst [vmem:[#allocation3 + $0x38] sm:$0xff] %v241
    %v251 = vld [vmem:[#allocation7] sm:$0xff]
    %s252 = scalar_lea.vmem [#allocation7], 16
    %v253 = vld [vmem:[%s252] sm:$0xff]
    %v254 = vld [vmem:[#allocation3] sm:$0xff]
    %v256 = vsel %vm151, %v251, 0
    %258 = vmatpush.msra.mxu0 0.0
    %259 = vmatpush.msra.mxu0 0.0
    %260 = vmatpush.msra.mxu0 0.0
    %261 = vmatpush.msra.mxu0 0.0
    %262 = vmatpush.msra.mxu0 0.0
    %263 = vmatpush.msra.mxu0 0.0
    %264 = vmatpush.msra.mxu0 0.0
    %265 = vmatpush.msra.mxu0 0.0
    %266 = vmatpush.msra.mxu0 0.0
    %267 = vmatpush.msra.mxu0 0.0
    %268 = vmatpush.msra.mxu0 0.0
    %269 = vmatpush.msra.mxu0 0.0
    %270 = vmatpush.msra.mxu0 %v163
    %271 = vmatpush.msra.mxu0 %v162
    %272 = vmatpush.msra.mxu0 %v161
    %273 = vmatpush.msra.mxu0 %v160
    %274 = vmatmul.f32.gmra.mxu0 %v256
    %v275 = vpop.f32.mrf.mxu0
    %v276 = vadd.f32 0.0, %v275
    %277 = vdwg.mxu0
    %v278 = vadd.f32 %v254, %v276
    %v279 = vxor.u32 %v278, 2147483648
    %v280 = vmul.f32 %v279, 1.442695
    %v281 = vpow.pop %v280
    %v282 = vadd.f32 %v281, 1.0
    %v283 = vrcp.pop %v282
    %v284 = vmul.f32 %v282, %v283
    %v285 = vsub.f32 1.0, %v284
    %v286 = vmul.f32 %v283, %v285
    %v287 = vadd.f32 %v283, %v286
    %vm288 = vweird.f32 %v282
    %vm289 = vweird.f32 %v283
    %vm290 = vmor %vm288, %vm289
    %v291 = vsel %vm290, %v283, %v287
    %v292 = vand.u32 2147483647, %v282
    %vm293 = vcmp.eq.f32.partialorder %v292, 8.507059e+37
    %v294 = vand.u32 %v282, 2147483648
    %v295 = vor.u32 1.1754944e-38, %v294
    %v296 = vsel %vm293, %v295, %v291
    %v297 = vmul.f32 1.0, %v296
    %v298 = vtanh.pop %v278
    %300 = vrot.lane.b32.xlu0 %v253, 32
    %v301 = vpop.permute.xlu0 %300
    %v303 = vmul.f32 %v297, %v301
    %305 = vrot.lane.b32.xlu0 %v298, 64
    %v306 = vpop.permute.xlu0 %305
    %v308 = vmul.f32 %v297, %v306
    %310 = vrot.lane.b32.xlu0 %v308, 32
    %v311 = vpop.permute.xlu0 %310
    %v313 = vadd.f32 %v303, %v311
    %v314 = vtanh.pop %v313
    %316 = vrot.lane.b32.xlu0 %v314, 64
    %v317 = vpop.permute.xlu0 %316
    %v319 = vmul.f32 %v297, %v317
    %321 = vrot.lane.b32.xlu0 %v319, 32
    %v322 = vpop.permute.xlu0 %321
    %324 = vst.msk [vmem:[#allocation2] sm:$0xff] %vm151, %v322
    %s325 = scalar_lea.vmem [#allocation3], 8
    %v326 = vld [vmem:[%s325] sm:$0xff]
    %v327 = vsel %vm151, %v322, 0
    %329 = vmatpush.msra.mxu0 0.0
    %330 = vmatpush.msra.mxu0 0.0
    %331 = vmatpush.msra.mxu0 0.0
    %332 = vmatpush.msra.mxu0 0.0
    %333 = vmatpush.msra.mxu0 0.0
    %334 = vmatpush.msra.mxu0 0.0
    %335 = vmatpush.msra.mxu0 0.0
    %336 = vmatpush.msra.mxu0 0.0
    %337 = vmatpush.msra.mxu0 0.0
    %338 = vmatpush.msra.mxu0 0.0
    %339 = vmatpush.msra.mxu0 0.0
    %340 = vmatpush.msra.mxu0 0.0
    %341 = vmatpush.msra.mxu0 %v163
    %342 = vmatpush.msra.mxu0 %v162
    %343 = vmatpush.msra.mxu0 %v161
    %344 = vmatpush.msra.mxu0 %v160
    %345 = vmatmul.f32.gmra.mxu0 %v327
    %v346 = vpop.f32.mrf.mxu0
    %v347 = vadd.f32 0.0, %v346
    %348 = vdwg.mxu0
    %v349 = vadd.f32 %v326, %v347
    %v350 = vxor.u32 %v349, 2147483648
    %v351 = vmul.f32 %v350, 1.442695
    %v352 = vpow.pop %v351
    %v353 = vadd.f32 %v352, 1.0
    %v354 = vrcp.pop %v353
    %v355 = vmul.f32 %v353, %v354
    %v356 = vsub.f32 1.0, %v355
    %v357 = vmul.f32 %v354, %v356
    %v358 = vadd.f32 %v354, %v357
    %vm359 = vweird.f32 %v353
    %vm360 = vweird.f32 %v354
    %vm361 = vmor %vm359, %vm360
    %v362 = vsel %vm361, %v354, %v358
    %v363 = vand.u32 2147483647, %v353
    %vm364 = vcmp.eq.f32.partialorder %v363, 8.507059e+37
    %v365 = vand.u32 %v353, 2147483648
    %v366 = vor.u32 1.1754944e-38, %v365
    %v367 = vsel %vm364, %v366, %v362
    %v368 = vmul.f32 1.0, %v367
    %v369 = vtanh.pop %v349
    %v370 = vmul.f32 %v368, %v313
    %372 = vrot.lane.b32.xlu0 %v369, 64
    %v373 = vpop.permute.xlu0 %372
    %v375 = vmul.f32 %v368, %v373
    %377 = vrot.lane.b32.xlu0 %v375, 32
    %v378 = vpop.permute.xlu0 %377
    %v380 = vadd.f32 %v370, %v378
    %v381 = vtanh.pop %v380
    %383 = vrot.lane.b32.xlu0 %v381, 64
    %v384 = vpop.permute.xlu0 %383
    %v386 = vmul.f32 %v368, %v384
    %388 = vrot.lane.b32.xlu0 %v386, 32
    %v389 = vpop.permute.xlu0 %388
    %s391 = scalar_lea.vmem [#allocation2], 8
    %392 = vst.msk [vmem:[%s391] sm:$0xff] %vm151, %v389
    %s393 = scalar_lea.vmem [#allocation3], 16
    %v394 = vld [vmem:[%s393] sm:$0xff]
    %v395 = vsel %vm151, %v389, 0
    %397 = vmatpush.msra.mxu0 0.0
    %398 = vmatpush.msra.mxu0 0.0
    %399 = vmatpush.msra.mxu0 0.0
    %400 = vmatpush.msra.mxu0 0.0
    %401 = vmatpush.msra.mxu0 0.0
    %402 = vmatpush.msra.mxu0 0.0
    %403 = vmatpush.msra.mxu0 0.0
    %404 = vmatpush.msra.mxu0 0.0
    %405 = vmatpush.msra.mxu0 0.0
    %406 = vmatpush.msra.mxu0 0.0
    %407 = vmatpush.msra.mxu0 0.0
    %408 = vmatpush.msra.mxu0 0.0
    %409 = vmatpush.msra.mxu0 %v163
    %410 = vmatpush.msra.mxu0 %v162
    %411 = vmatpush.msra.mxu0 %v161
    %412 = vmatpush.msra.mxu0 %v160
    %413 = vmatmul.f32.gmra.mxu0 %v395
    %v414 = vpop.f32.mrf.mxu0
    %v415 = vadd.f32 0.0, %v414
    %416 = vdwg.mxu0
    %v417 = vadd.f32 %v394, %v415
    %v418 = vxor.u32 %v417, 2147483648
    %v419 = vmul.f32 %v418, 1.442695
    %v420 = vpow.pop %v419
    %v421 = vadd.f32 %v420, 1.0
    %v422 = vrcp.pop %v421
    %v423 = vmul.f32 %v421, %v422
    %v424 = vsub.f32 1.0, %v423
    %v425 = vmul.f32 %v422, %v424
    %v426 = vadd.f32 %v422, %v425
    %vm427 = vweird.f32 %v421
    %vm428 = vweird.f32 %v422
    %vm429 = vmor %vm427, %vm428
    %v430 = vsel %vm429, %v422, %v426
    %v431 = vand.u32 2147483647, %v421
    %vm432 = vcmp.eq.f32.partialorder %v431, 8.507059e+37
    %v433 = vand.u32 %v421, 2147483648
    %v434 = vor.u32 1.1754944e-38, %v433
    %v435 = vsel %vm432, %v434, %v430
    %v436 = vmul.f32 1.0, %v435
    %v437 = vtanh.pop %v417
    %v438 = vmul.f32 %v436, %v380
    %440 = vrot.lane.b32.xlu0 %v437, 64
    %v441 = vpop.permute.xlu0 %440
    %v443 = vmul.f32 %v436, %v441
    %445 = vrot.lane.b32.xlu0 %v443, 32
    %v446 = vpop.permute.xlu0 %445
    %v448 = vadd.f32 %v438, %v446
    %v449 = vtanh.pop %v448
    %451 = vrot.lane.b32.xlu0 %v449, 64
    %v452 = vpop.permute.xlu0 %451
    %v454 = vmul.f32 %v436, %v452
    %456 = vrot.lane.b32.xlu0 %v454, 32
    %v457 = vpop.permute.xlu0 %456
    %s459 = scalar_lea.vmem [#allocation2], 16
    %460 = vst.msk [vmem:[%s459] sm:$0xff] %vm151, %v457
    %s461 = scalar_lea.vmem [#allocation3], 24
    %v462 = vld [vmem:[%s461] sm:$0xff]
    %v463 = vsel %vm151, %v457, 0
    %465 = vmatpush.msra.mxu0 0.0
    %466 = vmatpush.msra.mxu0 0.0
    %467 = vmatpush.msra.mxu0 0.0
    %468 = vmatpush.msra.mxu0 0.0
    %469 = vmatpush.msra.mxu0 0.0
    %470 = vmatpush.msra.mxu0 0.0
    %471 = vmatpush.msra.mxu0 0.0
    %472 = vmatpush.msra.mxu0 0.0
    %473 = vmatpush.msra.mxu0 0.0
    %474 = vmatpush.msra.mxu0 0.0
    %475 = vmatpush.msra.mxu0 0.0
    %476 = vmatpush.msra.mxu0 0.0
    %477 = vmatpush.msra.mxu0 %v163
    %478 = vmatpush.msra.mxu0 %v162
    %479 = vmatpush.msra.mxu0 %v161
    %480 = vmatpush.msra.mxu0 %v160
    %481 = vmatmul.f32.gmra.mxu0 %v463
    %v482 = vpop.f32.mrf.mxu0
    %v483 = vadd.f32 0.0, %v482
    %484 = vdwg.mxu0
    %v485 = vadd.f32 %v462, %v483
    %v486 = vxor.u32 %v485, 2147483648
    %v487 = vmul.f32 %v486, 1.442695
    %v488 = vpow.pop %v487
    %v489 = vadd.f32 %v488, 1.0
    %v490 = vrcp.pop %v489
    %v491 = vmul.f32 %v489, %v490
    %v492 = vsub.f32 1.0, %v491
    %v493 = vmul.f32 %v490, %v492
    %v494 = vadd.f32 %v490, %v493
    %vm495 = vweird.f32 %v489
    %vm496 = vweird.f32 %v490
    %vm497 = vmor %vm495, %vm496
    %v498 = vsel %vm497, %v490, %v494
    %v499 = vand.u32 2147483647, %v489
    %vm500 = vcmp.eq.f32.partialorder %v499, 8.507059e+37
    %v501 = vand.u32 %v489, 2147483648
    %v502 = vor.u32 1.1754944e-38, %v501
    %v503 = vsel %vm500, %v502, %v498
    %v504 = vmul.f32 1.0, %v503
    %v505 = vtanh.pop %v485
    %v506 = vmul.f32 %v504, %v448
    %508 = vrot.lane.b32.xlu0 %v505, 64
    %v509 = vpop.permute.xlu0 %508
    %v511 = vmul.f32 %v504, %v509
    %513 = vrot.lane.b32.xlu0 %v511, 32
    %v514 = vpop.permute.xlu0 %513
    %v516 = vadd.f32 %v506, %v514
    %v517 = vtanh.pop %v516
    %519 = vrot.lane.b32.xlu0 %v517, 64
    %v520 = vpop.permute.xlu0 %519
    %v522 = vmul.f32 %v504, %v520
    %524 = vrot.lane.b32.xlu0 %v522, 32
    %v525 = vpop.permute.xlu0 %524
    %s527 = scalar_lea.vmem [#allocation2], 24
    %528 = vst.msk [vmem:[%s527] sm:$0xff] %vm151, %v525
    %s529 = scalar_lea.vmem [#allocation3], 32
    %v530 = vld [vmem:[%s529] sm:$0xff]
    %v531 = vsel %vm151, %v525, 0
    %533 = vmatpush.msra.mxu0 0.0
    %534 = vmatpush.msra.mxu0 0.0
    %535 = vmatpush.msra.mxu0 0.0
    %536 = vmatpush.msra.mxu0 0.0
    %537 = vmatpush.msra.mxu0 0.0
    %538 = vmatpush.msra.mxu0 0.0
    %539 = vmatpush.msra.mxu0 0.0
    %540 = vmatpush.msra.mxu0 0.0
    %541 = vmatpush.msra.mxu0 0.0
    %542 = vmatpush.msra.mxu0 0.0
    %543 = vmatpush.msra.mxu0 0.0
    %544 = vmatpush.msra.mxu0 0.0
    %545 = vmatpush.msra.mxu0 %v163
    %546 = vmatpush.msra.mxu0 %v162
    %547 = vmatpush.msra.mxu0 %v161
    %548 = vmatpush.msra.mxu0 %v160
    %549 = vmatmul.f32.gmra.mxu0 %v531
    %v550 = vpop.f32.mrf.mxu0
    %v551 = vadd.f32 0.0, %v550
    %552 = vdwg.mxu0
    %v553 = vadd.f32 %v530, %v551
    %v554 = vxor.u32 %v553, 2147483648
    %v555 = vmul.f32 %v554, 1.442695
    %v556 = vpow.pop %v555
    %v557 = vadd.f32 %v556, 1.0
    %v558 = vrcp.pop %v557
    %v559 = vmul.f32 %v557, %v558
    %v560 = vsub.f32 1.0, %v559
    %v561 = vmul.f32 %v558, %v560
    %v562 = vadd.f32 %v558, %v561
    %vm563 = vweird.f32 %v557
    %vm564 = vweird.f32 %v558
    %vm565 = vmor %vm563, %vm564
    %v566 = vsel %vm565, %v558, %v562
    %v567 = vand.u32 2147483647, %v557
    %vm568 = vcmp.eq.f32.partialorder %v567, 8.507059e+37
    %v569 = vand.u32 %v557, 2147483648
    %v570 = vor.u32 1.1754944e-38, %v569
    %v571 = vsel %vm568, %v570, %v566
    %v572 = vmul.f32 1.0, %v571
    %v573 = vtanh.pop %v553
    %v574 = vmul.f32 %v572, %v516
    %576 = vrot.lane.b32.xlu0 %v573, 64
    %v577 = vpop.permute.xlu0 %576
    %v579 = vmul.f32 %v572, %v577
    %581 = vrot.lane.b32.xlu0 %v579, 32
    %v582 = vpop.permute.xlu0 %581
    %v584 = vadd.f32 %v574, %v582
    %v585 = vtanh.pop %v584
    %587 = vrot.lane.b32.xlu0 %v585, 64
    %v588 = vpop.permute.xlu0 %587
    %v590 = vmul.f32 %v572, %v588
    %592 = vrot.lane.b32.xlu0 %v590, 32
    %v593 = vpop.permute.xlu0 %592
    %s595 = scalar_lea.vmem [#allocation2], 32
    %596 = vst.msk [vmem:[%s595] sm:$0xff] %vm151, %v593
    %s597 = scalar_lea.vmem [#allocation3], 40
    %v598 = vld [vmem:[%s597] sm:$0xff]
    %v599 = vsel %vm151, %v593, 0
    %601 = vmatpush.msra.mxu0 0.0
    %602 = vmatpush.msra.mxu0 0.0
    %603 = vmatpush.msra.mxu0 0.0
    %604 = vmatpush.msra.mxu0 0.0
    %605 = vmatpush.msra.mxu0 0.0
    %606 = vmatpush.msra.mxu0 0.0
    %607 = vmatpush.msra.mxu0 0.0
    %608 = vmatpush.msra.mxu0 0.0
    %609 = vmatpush.msra.mxu0 0.0
    %610 = vmatpush.msra.mxu0 0.0
    %611 = vmatpush.msra.mxu0 0.0
    %612 = vmatpush.msra.mxu0 0.0
    %613 = vmatpush.msra.mxu0 %v163
    %614 = vmatpush.msra.mxu0 %v162
    %615 = vmatpush.msra.mxu0 %v161
    %616 = vmatpush.msra.mxu0 %v160
    %617 = vmatmul.f32.gmra.mxu0 %v599
    %v618 = vpop.f32.mrf.mxu0
    %v619 = vadd.f32 0.0, %v618
    %620 = vdwg.mxu0
    %v621 = vadd.f32 %v598, %v619
    %v622 = vxor.u32 %v621, 2147483648
    %v623 = vmul.f32 %v622, 1.442695
    %v624 = vpow.pop %v623
    %v625 = vadd.f32 %v624, 1.0
    %v626 = vrcp.pop %v625
    %v627 = vmul.f32 %v625, %v626
    %v628 = vsub.f32 1.0, %v627
    %v629 = vmul.f32 %v626, %v628
    %v630 = vadd.f32 %v626, %v629
    %vm631 = vweird.f32 %v625
    %vm632 = vweird.f32 %v626
    %vm633 = vmor %vm631, %vm632
    %v634 = vsel %vm633, %v626, %v630
    %v635 = vand.u32 2147483647, %v625
    %vm636 = vcmp.eq.f32.partialorder %v635, 8.507059e+37
    %v637 = vand.u32 %v625, 2147483648
    %v638 = vor.u32 1.1754944e-38, %v637
    %v639 = vsel %vm636, %v638, %v634
    %v640 = vmul.f32 1.0, %v639
    %v641 = vtanh.pop %v621
    %v642 = vmul.f32 %v640, %v584
    %644 = vrot.lane.b32.xlu0 %v641, 64
    %v645 = vpop.permute.xlu0 %644
    %v647 = vmul.f32 %v640, %v645
    %649 = vrot.lane.b32.xlu0 %v647, 32
    %v650 = vpop.permute.xlu0 %649
    %v652 = vadd.f32 %v642, %v650
    %v653 = vtanh.pop %v652
    %655 = vrot.lane.b32.xlu0 %v653, 64
    %v656 = vpop.permute.xlu0 %655
    %v658 = vmul.f32 %v640, %v656
    %660 = vrot.lane.b32.xlu0 %v658, 32
    %v661 = vpop.permute.xlu0 %660
    %s663 = scalar_lea.vmem [#allocation2], 40
    %664 = vst.msk [vmem:[%s663] sm:$0xff] %vm151, %v661
    %s665 = scalar_lea.vmem [#allocation3], 48
    %v666 = vld [vmem:[%s665] sm:$0xff]
    %v667 = vsel %vm151, %v661, 0
    %669 = vmatpush.msra.mxu0 0.0
    %670 = vmatpush.msra.mxu0 0.0
    %671 = vmatpush.msra.mxu0 0.0
    %672 = vmatpush.msra.mxu0 0.0
    %673 = vmatpush.msra.mxu0 0.0
    %674 = vmatpush.msra.mxu0 0.0
    %675 = vmatpush.msra.mxu0 0.0
    %676 = vmatpush.msra.mxu0 0.0
    %677 = vmatpush.msra.mxu0 0.0
    %678 = vmatpush.msra.mxu0 0.0
    %679 = vmatpush.msra.mxu0 0.0
    %680 = vmatpush.msra.mxu0 0.0
    %681 = vmatpush.msra.mxu0 %v163
    %682 = vmatpush.msra.mxu0 %v162
    %683 = vmatpush.msra.mxu0 %v161
    %684 = vmatpush.msra.mxu0 %v160
    %685 = vmatmul.f32.gmra.mxu0 %v667
    %v686 = vpop.f32.mrf.mxu0
    %v687 = vadd.f32 0.0, %v686
    %688 = vdwg.mxu0
    %v689 = vadd.f32 %v666, %v687
    %v690 = vxor.u32 %v689, 2147483648
    %v691 = vmul.f32 %v690, 1.442695
    %v692 = vpow.pop %v691
    %v693 = vadd.f32 %v692, 1.0
    %v694 = vrcp.pop %v693
    %v695 = vmul.f32 %v693, %v694
    %v696 = vsub.f32 1.0, %v695
    %v697 = vmul.f32 %v694, %v696
    %v698 = vadd.f32 %v694, %v697
    %vm699 = vweird.f32 %v693
    %vm700 = vweird.f32 %v694
    %vm701 = vmor %vm699, %vm700
    %v702 = vsel %vm701, %v694, %v698
    %v703 = vand.u32 2147483647, %v693
    %vm704 = vcmp.eq.f32.partialorder %v703, 8.507059e+37
    %v705 = vand.u32 %v693, 2147483648
    %v706 = vor.u32 1.1754944e-38, %v705
    %v707 = vsel %vm704, %v706, %v702
    %v708 = vmul.f32 1.0, %v707
    %v709 = vtanh.pop %v689
    %v710 = vmul.f32 %v708, %v652
    %712 = vrot.lane.b32.xlu0 %v709, 64
    %v713 = vpop.permute.xlu0 %712
    %v715 = vmul.f32 %v708, %v713
    %717 = vrot.lane.b32.xlu0 %v715, 32
    %v718 = vpop.permute.xlu0 %717
    %v720 = vadd.f32 %v710, %v718
    %v721 = vtanh.pop %v720
    %723 = vrot.lane.b32.xlu0 %v721, 64
    %v724 = vpop.permute.xlu0 %723
    %v726 = vmul.f32 %v708, %v724
    %728 = vrot.lane.b32.xlu0 %v726, 32
    %v729 = vpop.permute.xlu0 %728
    %s731 = scalar_lea.vmem [#allocation2], 48
    %732 = vst.msk [vmem:[%s731] sm:$0xff] %vm151, %v729
    %s733 = scalar_lea.vmem [#allocation3], 56
    %v734 = vld [vmem:[%s733] sm:$0xff]
    %v735 = vsel %vm151, %v729, 0
    %737 = vmatpush.msra.mxu0 0.0
    %738 = vmatpush.msra.mxu0 0.0
    %739 = vmatpush.msra.mxu0 0.0
    %740 = vmatpush.msra.mxu0 0.0
    %741 = vmatpush.msra.mxu0 0.0
    %742 = vmatpush.msra.mxu0 0.0
    %743 = vmatpush.msra.mxu0 0.0
    %744 = vmatpush.msra.mxu0 0.0
    %745 = vmatpush.msra.mxu0 0.0
    %746 = vmatpush.msra.mxu0 0.0
    %747 = vmatpush.msra.mxu0 0.0
    %748 = vmatpush.msra.mxu0 0.0
    %749 = vmatpush.msra.mxu0 %v163
    %750 = vmatpush.msra.mxu0 %v162
    %751 = vmatpush.msra.mxu0 %v161
    %752 = vmatpush.msra.mxu0 %v160
    %753 = vmatmul.f32.gmra.mxu0 %v735
    %v754 = vpop.f32.mrf.mxu0
    %v755 = vadd.f32 0.0, %v754
    %756 = vdwg.mxu0
    %v757 = vadd.f32 %v734, %v755
    %v758 = vxor.u32 %v757, 2147483648
    %v759 = vmul.f32 %v758, 1.442695
    %v760 = vpow.pop %v759
    %v761 = vadd.f32 %v760, 1.0
    %v762 = vrcp.pop %v761
    %v763 = vmul.f32 %v761, %v762
    %v764 = vsub.f32 1.0, %v763
    %v765 = vmul.f32 %v762, %v764
    %v766 = vadd.f32 %v762, %v765
    %vm767 = vweird.f32 %v761
    %vm768 = vweird.f32 %v762
    %vm769 = vmor %vm767, %vm768
    %v770 = vsel %vm769, %v762, %v766
    %v771 = vand.u32 2147483647, %v761
    %vm772 = vcmp.eq.f32.partialorder %v771, 8.507059e+37
    %v773 = vand.u32 %v761, 2147483648
    %v774 = vor.u32 1.1754944e-38, %v773
    %v775 = vsel %vm772, %v774, %v770
    %v776 = vmul.f32 1.0, %v775
    %v777 = vtanh.pop %v757
    %v778 = vmul.f32 %v776, %v720
    %780 = vrot.lane.b32.xlu0 %v777, 64
    %v781 = vpop.permute.xlu0 %780
    %v783 = vmul.f32 %v776, %v781
    %785 = vrot.lane.b32.xlu0 %v783, 32
    %v786 = vpop.permute.xlu0 %785
    %v788 = vadd.f32 %v778, %v786
    %v789 = vtanh.pop %v788
    %791 = vrot.lane.b32.xlu0 %v789, 64
    %v792 = vpop.permute.xlu0 %791
    %v794 = vmul.f32 %v776, %v792
    %796 = vrot.lane.b32.xlu0 %v794, 32
    %v797 = vpop.permute.xlu0 %796
    %s799 = scalar_lea.vmem [#allocation2], 56
    %800 = vst.msk [vmem:[%s799] sm:$0xff] %vm151, %v797
    %801 = vst.msk [vmem:[#allocation11] sm:$0xff] %vm151, %v797
    %803 = vrot.lane.b32.xlu0 %v788, 96
    %v804 = vpop.permute.xlu0 %803
    %s806 = scalar_lea.vmem [#allocation11], 16
    %807 = vst.msk [vmem:[%s806] sm:$0xff] %vm151, %v804
    %v808 = vld [vmem:[#allocation9 + $0x60] sm:$0xff]
    %v809 = vld [vmem:[#allocation9 + $0x68] sm:$0xff]
    %v810 = vld [vmem:[#allocation9 + $0x70] sm:$0xff]
    %v811 = vld [vmem:[#allocation9 + $0x78] sm:$0xff]
    %v812 = vld [vmem:[#allocation2] sm:$0xff]
    %v813 = vld [vmem:[#allocation2 + $0x8] sm:$0xff]
    %v814 = vld [vmem:[#allocation2 + $0x10] sm:$0xff]
    %v815 = vld [vmem:[#allocation2 + $0x18] sm:$0xff]
    %v816 = vld [vmem:[#allocation2 + $0x20] sm:$0xff]
    %v817 = vld [vmem:[#allocation2 + $0x28] sm:$0xff]
    %v818 = vld [vmem:[#allocation2 + $0x30] sm:$0xff]
    %v819 = vld [vmem:[#allocation2 + $0x38] sm:$0xff]
    %v820 = vld [vmem:[#allocation9 + $0x20] sm:$0xff]
    %v821 = vld [vmem:[#allocation9 + $0x28] sm:$0xff]
    %v822 = vld [vmem:[#allocation9 + $0x30] sm:$0xff]
    %v823 = vld [vmem:[#allocation9 + $0x38] sm:$0xff]
    %v824 = vld [vmem:[#allocation9 + $0xb2] sm:$0x1]
    %v825 = vperm.slane %v824, 0
    %v827 = vsel %vm151, %v812, 0
    %v830 = vsel %vm151, %v813, 0
    %v833 = vsel %vm151, %v814, 0
    %v836 = vsel %vm151, %v815, 0
    %v839 = vsel %vm151, %v816, 0
    %v842 = vsel %vm151, %v817, 0
    %v845 = vsel %vm151, %v818, 0
    %v848 = vsel %vm151, %v819, 0
    %850 = vmatpush.msra.mxu0 0.0
    %851 = vmatpush.msra.mxu0 0.0
    %852 = vmatpush.msra.mxu0 0.0
    %853 = vmatpush.msra.mxu0 0.0
    %854 = vmatpush.msra.mxu0 0.0
    %855 = vmatpush.msra.mxu0 0.0
    %856 = vmatpush.msra.mxu0 0.0
    %857 = vmatpush.msra.mxu0 0.0
    %858 = vmatpush.msra.mxu0 0.0
    %859 = vmatpush.msra.mxu0 0.0
    %860 = vmatpush.msra.mxu0 0.0
    %861 = vmatpush.msra.mxu0 0.0
    %862 = vmatpush.msra.mxu0 %v823
    %863 = vmatpush.msra.mxu0 %v822
    %864 = vmatpush.msra.mxu0 %v821
    %865 = vmatpush.msra.mxu0 %v820
    %866 = vmatmul.f32.gmra.mxu0 %v827
    %v867 = vpop.f32.mrf.mxu0
    %v868 = vadd.f32 %v825, %v867
    %869 = vmatmul.f32.gmra.mxu0 %v830
    %v870 = vpop.f32.mrf.mxu0
    %v871 = vadd.f32 %v825, %v870
    %872 = vmatmul.f32.gmra.mxu0 %v833
    %v873 = vpop.f32.mrf.mxu0
    %v874 = vadd.f32 %v825, %v873
    %875 = vmatmul.f32.gmra.mxu0 %v836
    %v876 = vpop.f32.mrf.mxu0
    %v877 = vadd.f32 %v825, %v876
    %878 = vmatmul.f32.gmra.mxu0 %v839
    %v879 = vpop.f32.mrf.mxu0
    %v880 = vadd.f32 %v825, %v879
    %881 = vmatmul.f32.gmra.mxu0 %v842
    %v882 = vpop.f32.mrf.mxu0
    %v883 = vadd.f32 %v825, %v882
    %884 = vmatmul.f32.gmra.mxu0 %v845
    %v885 = vpop.f32.mrf.mxu0
    %v886 = vadd.f32 %v825, %v885
    %887 = vmatmul.f32.gmra.mxu0 %v848
    %v888 = vpop.f32.mrf.mxu0
    %v889 = vadd.f32 %v825, %v888
    %890 = vdwg.mxu0
    %891 = vst [vmem:[#allocation3] sm:$0xff] %v868
    %892 = vst [vmem:[#allocation3 + $0x8] sm:$0xff] %v871
    %893 = vst [vmem:[#allocation3 + $0x10] sm:$0xff] %v874
    %894 = vst [vmem:[#allocation3 + $0x18] sm:$0xff] %v877
    %895 = vst [vmem:[#allocation3 + $0x20] sm:$0xff] %v880
    %896 = vst [vmem:[#allocation3 + $0x28] sm:$0xff] %v883
    %897 = vst [vmem:[#allocation3 + $0x30] sm:$0xff] %v886
    %898 = vst [vmem:[#allocation3 + $0x38] sm:$0xff] %v889
    %s899 = scalar_lea.vmem [#allocation7], 8
    %v900 = vld [vmem:[%s899] sm:$0xff]
    %s901 = scalar_lea.vmem [#allocation7], 24
    %v902 = vld [vmem:[%s901] sm:$0xff]
    %v903 = vld [vmem:[#allocation3] sm:$0xff]
    %v905 = vsel %vm151, %v900, 0
    %907 = vmatpush.msra.mxu0 0.0
    %908 = vmatpush.msra.mxu0 0.0
    %909 = vmatpush.msra.mxu0 0.0
    %910 = vmatpush.msra.mxu0 0.0
    %911 = vmatpush.msra.mxu0 0.0
    %912 = vmatpush.msra.mxu0 0.0
    %913 = vmatpush.msra.mxu0 0.0
    %914 = vmatpush.msra.mxu0 0.0
    %915 = vmatpush.msra.mxu0 0.0
    %916 = vmatpush.msra.mxu0 0.0
    %917 = vmatpush.msra.mxu0 0.0
    %918 = vmatpush.msra.mxu0 0.0
    %919 = vmatpush.msra.mxu0 %v811
    %920 = vmatpush.msra.mxu0 %v810
    %921 = vmatpush.msra.mxu0 %v809
    %922 = vmatpush.msra.mxu0 %v808
    %923 = vmatmul.f32.gmra.mxu0 %v905
    %v924 = vpop.f32.mrf.mxu0
    %v925 = vadd.f32 0.0, %v924
    %926 = vdwg.mxu0
    %v927 = vadd.f32 %v903, %v925
    %v928 = vxor.u32 %v927, 2147483648
    %v929 = vmul.f32 %v928, 1.442695
    %v930 = vpow.pop %v929
    %v931 = vadd.f32 %v930, 1.0
    %v932 = vrcp.pop %v931
    %v933 = vmul.f32 %v931, %v932
    %v934 = vsub.f32 1.0, %v933
    %v935 = vmul.f32 %v932, %v934
    %v936 = vadd.f32 %v932, %v935
    %vm937 = vweird.f32 %v931
    %vm938 = vweird.f32 %v932
    %vm939 = vmor %vm937, %vm938
    %v940 = vsel %vm939, %v932, %v936
    %v941 = vand.u32 2147483647, %v931
    %vm942 = vcmp.eq.f32.partialorder %v941, 8.507059e+37
    %v943 = vand.u32 %v931, 2147483648
    %v944 = vor.u32 1.1754944e-38, %v943
    %v945 = vsel %vm942, %v944, %v940
    %v946 = vmul.f32 1.0, %v945
    %v947 = vtanh.pop %v927
    %949 = vrot.lane.b32.xlu0 %v902, 32
    %v950 = vpop.permute.xlu0 %949
    %v952 = vmul.f32 %v946, %v950
    %954 = vrot.lane.b32.xlu0 %v947, 64
    %v955 = vpop.permute.xlu0 %954
    %v957 = vmul.f32 %v946, %v955
    %959 = vrot.lane.b32.xlu0 %v957, 32
    %v960 = vpop.permute.xlu0 %959
    %v962 = vadd.f32 %v952, %v960
    %v963 = vtanh.pop %v962
    %965 = vrot.lane.b32.xlu0 %v963, 64
    %v966 = vpop.permute.xlu0 %965
    %v968 = vmul.f32 %v946, %v966
    %970 = vrot.lane.b32.xlu0 %v968, 32
    %v971 = vpop.permute.xlu0 %970
    %973 = vst.msk [vmem:[#allocation2] sm:$0xff] %vm151, %v971
    %v974 = vld [vmem:[%s325] sm:$0xff]
    %v975 = vsel %vm151, %v971, 0
    %977 = vmatpush.msra.mxu0 0.0
    %978 = vmatpush.msra.mxu0 0.0
    %979 = vmatpush.msra.mxu0 0.0
    %980 = vmatpush.msra.mxu0 0.0
    %981 = vmatpush.msra.mxu0 0.0
    %982 = vmatpush.msra.mxu0 0.0
    %983 = vmatpush.msra.mxu0 0.0
    %984 = vmatpush.msra.mxu0 0.0
    %985 = vmatpush.msra.mxu0 0.0
    %986 = vmatpush.msra.mxu0 0.0
    %987 = vmatpush.msra.mxu0 0.0
    %988 = vmatpush.msra.mxu0 0.0
    %989 = vmatpush.msra.mxu0 %v811
    %990 = vmatpush.msra.mxu0 %v810
    %991 = vmatpush.msra.mxu0 %v809
    %992 = vmatpush.msra.mxu0 %v808
    %993 = vmatmul.f32.gmra.mxu0 %v975
    %v994 = vpop.f32.mrf.mxu0
    %v995 = vadd.f32 0.0, %v994
    %996 = vdwg.mxu0
    %v997 = vadd.f32 %v974, %v995
    %v998 = vxor.u32 %v997, 2147483648
    %v999 = vmul.f32 %v998, 1.442695
    %v1000 = vpow.pop %v999
    %v1001 = vadd.f32 %v1000, 1.0
    %v1002 = vrcp.pop %v1001
    %v1003 = vmul.f32 %v1001, %v1002
    %v1004 = vsub.f32 1.0, %v1003
    %v1005 = vmul.f32 %v1002, %v1004
    %v1006 = vadd.f32 %v1002, %v1005
    %vm1007 = vweird.f32 %v1001
    %vm1008 = vweird.f32 %v1002
    %vm1009 = vmor %vm1007, %vm1008
    %v1010 = vsel %vm1009, %v1002, %v1006
    %v1011 = vand.u32 2147483647, %v1001
    %vm1012 = vcmp.eq.f32.partialorder %v1011, 8.507059e+37
    %v1013 = vand.u32 %v1001, 2147483648
    %v1014 = vor.u32 1.1754944e-38, %v1013
    %v1015 = vsel %vm1012, %v1014, %v1010
    %v1016 = vmul.f32 1.0, %v1015
    %v1017 = vtanh.pop %v997
    %v1018 = vmul.f32 %v1016, %v962
    %1020 = vrot.lane.b32.xlu0 %v1017, 64
    %v1021 = vpop.permute.xlu0 %1020
    %v1023 = vmul.f32 %v1016, %v1021
    %1025 = vrot.lane.b32.xlu0 %v1023, 32
    %v1026 = vpop.permute.xlu0 %1025
    %v1028 = vadd.f32 %v1018, %v1026
    %v1029 = vtanh.pop %v1028
    %1031 = vrot.lane.b32.xlu0 %v1029, 64
    %v1032 = vpop.permute.xlu0 %1031
    %v1034 = vmul.f32 %v1016, %v1032
    %1036 = vrot.lane.b32.xlu0 %v1034, 32
    %v1037 = vpop.permute.xlu0 %1036
    %1039 = vst.msk [vmem:[%s391] sm:$0xff] %vm151, %v1037
    %v1040 = vld [vmem:[%s393] sm:$0xff]
    %v1041 = vsel %vm151, %v1037, 0
    %1043 = vmatpush.msra.mxu0 0.0
    %1044 = vmatpush.msra.mxu0 0.0
    %1045 = vmatpush.msra.mxu0 0.0
    %1046 = vmatpush.msra.mxu0 0.0
    %1047 = vmatpush.msra.mxu0 0.0
    %1048 = vmatpush.msra.mxu0 0.0
    %1049 = vmatpush.msra.mxu0 0.0
    %1050 = vmatpush.msra.mxu0 0.0
    %1051 = vmatpush.msra.mxu0 0.0
    %1052 = vmatpush.msra.mxu0 0.0
    %1053 = vmatpush.msra.mxu0 0.0
    %1054 = vmatpush.msra.mxu0 0.0
    %1055 = vmatpush.msra.mxu0 %v811
    %1056 = vmatpush.msra.mxu0 %v810
    %1057 = vmatpush.msra.mxu0 %v809
    %1058 = vmatpush.msra.mxu0 %v808
    %1059 = vmatmul.f32.gmra.mxu0 %v1041
    %v1060 = vpop.f32.mrf.mxu0
    %v1061 = vadd.f32 0.0, %v1060
    %1062 = vdwg.mxu0
    %v1063 = vadd.f32 %v1040, %v1061
    %v1064 = vxor.u32 %v1063, 2147483648
    %v1065 = vmul.f32 %v1064, 1.442695
    %v1066 = vpow.pop %v1065
    %v1067 = vadd.f32 %v1066, 1.0
    %v1068 = vrcp.pop %v1067
    %v1069 = vmul.f32 %v1067, %v1068
    %v1070 = vsub.f32 1.0, %v1069
    %v1071 = vmul.f32 %v1068, %v1070
    %v1072 = vadd.f32 %v1068, %v1071
    %vm1073 = vweird.f32 %v1067
    %vm1074 = vweird.f32 %v1068
    %vm1075 = vmor %vm1073, %vm1074
    %v1076 = vsel %vm1075, %v1068, %v1072
    %v1077 = vand.u32 2147483647, %v1067
    %vm1078 = vcmp.eq.f32.partialorder %v1077, 8.507059e+37
    %v1079 = vand.u32 %v1067, 2147483648
    %v1080 = vor.u32 1.1754944e-38, %v1079
    %v1081 = vsel %vm1078, %v1080, %v1076
    %v1082 = vmul.f32 1.0, %v1081
    %v1083 = vtanh.pop %v1063
    %v1084 = vmul.f32 %v1082, %v1028
    %1086 = vrot.lane.b32.xlu0 %v1083, 64
    %v1087 = vpop.permute.xlu0 %1086
    %v1089 = vmul.f32 %v1082, %v1087
    %1091 = vrot.lane.b32.xlu0 %v1089, 32
    %v1092 = vpop.permute.xlu0 %1091
    %v1094 = vadd.f32 %v1084, %v1092
    %v1095 = vtanh.pop %v1094
    %1097 = vrot.lane.b32.xlu0 %v1095, 64
    %v1098 = vpop.permute.xlu0 %1097
    %v1100 = vmul.f32 %v1082, %v1098
    %1102 = vrot.lane.b32.xlu0 %v1100, 32
    %v1103 = vpop.permute.xlu0 %1102
    %1105 = vst.msk [vmem:[%s459] sm:$0xff] %vm151, %v1103
    %v1106 = vld [vmem:[%s461] sm:$0xff]
    %v1107 = vsel %vm151, %v1103, 0
    %1109 = vmatpush.msra.mxu0 0.0
    %1110 = vmatpush.msra.mxu0 0.0
    %1111 = vmatpush.msra.mxu0 0.0
    %1112 = vmatpush.msra.mxu0 0.0
    %1113 = vmatpush.msra.mxu0 0.0
    %1114 = vmatpush.msra.mxu0 0.0
    %1115 = vmatpush.msra.mxu0 0.0
    %1116 = vmatpush.msra.mxu0 0.0
    %1117 = vmatpush.msra.mxu0 0.0
    %1118 = vmatpush.msra.mxu0 0.0
    %1119 = vmatpush.msra.mxu0 0.0
    %1120 = vmatpush.msra.mxu0 0.0
    %1121 = vmatpush.msra.mxu0 %v811
    %1122 = vmatpush.msra.mxu0 %v810
    %1123 = vmatpush.msra.mxu0 %v809
    %1124 = vmatpush.msra.mxu0 %v808
    %1125 = vmatmul.f32.gmra.mxu0 %v1107
    %v1126 = vpop.f32.mrf.mxu0
    %v1127 = vadd.f32 0.0, %v1126
    %1128 = vdwg.mxu0
    %v1129 = vadd.f32 %v1106, %v1127
    %v1130 = vxor.u32 %v1129, 2147483648
    %v1131 = vmul.f32 %v1130, 1.442695
    %v1132 = vpow.pop %v1131
    %v1133 = vadd.f32 %v1132, 1.0
    %v1134 = vrcp.pop %v1133
    %v1135 = vmul.f32 %v1133, %v1134
    %v1136 = vsub.f32 1.0, %v1135
    %v1137 = vmul.f32 %v1134, %v1136
    %v1138 = vadd.f32 %v1134, %v1137
    %vm1139 = vweird.f32 %v1133
    %vm1140 = vweird.f32 %v1134
    %vm1141 = vmor %vm1139, %vm1140
    %v1142 = vsel %vm1141, %v1134, %v1138
    %v1143 = vand.u32 2147483647, %v1133
    %vm1144 = vcmp.eq.f32.partialorder %v1143, 8.507059e+37
    %v1145 = vand.u32 %v1133, 2147483648
    %v1146 = vor.u32 1.1754944e-38, %v1145
    %v1147 = vsel %vm1144, %v1146, %v1142
    %v1148 = vmul.f32 1.0, %v1147
    %v1149 = vtanh.pop %v1129
    %v1150 = vmul.f32 %v1148, %v1094
    %1152 = vrot.lane.b32.xlu0 %v1149, 64
    %v1153 = vpop.permute.xlu0 %1152
    %v1155 = vmul.f32 %v1148, %v1153
    %1157 = vrot.lane.b32.xlu0 %v1155, 32
    %v1158 = vpop.permute.xlu0 %1157
    %v1160 = vadd.f32 %v1150, %v1158
    %v1161 = vtanh.pop %v1160
    %1163 = vrot.lane.b32.xlu0 %v1161, 64
    %v1164 = vpop.permute.xlu0 %1163
    %v1166 = vmul.f32 %v1148, %v1164
    %1168 = vrot.lane.b32.xlu0 %v1166, 32
    %v1169 = vpop.permute.xlu0 %1168
    %1171 = vst.msk [vmem:[%s527] sm:$0xff] %vm151, %v1169
    %v1172 = vld [vmem:[%s529] sm:$0xff]
    %v1173 = vsel %vm151, %v1169, 0
    %1175 = vmatpush.msra.mxu0 0.0
    %1176 = vmatpush.msra.mxu0 0.0
    %1177 = vmatpush.msra.mxu0 0.0
    %1178 = vmatpush.msra.mxu0 0.0
    %1179 = vmatpush.msra.mxu0 0.0
    %1180 = vmatpush.msra.mxu0 0.0
    %1181 = vmatpush.msra.mxu0 0.0
    %1182 = vmatpush.msra.mxu0 0.0
    %1183 = vmatpush.msra.mxu0 0.0
    %1184 = vmatpush.msra.mxu0 0.0
    %1185 = vmatpush.msra.mxu0 0.0
    %1186 = vmatpush.msra.mxu0 0.0
    %1187 = vmatpush.msra.mxu0 %v811
    %1188 = vmatpush.msra.mxu0 %v810
    %1189 = vmatpush.msra.mxu0 %v809
    %1190 = vmatpush.msra.mxu0 %v808
    %1191 = vmatmul.f32.gmra.mxu0 %v1173
    %v1192 = vpop.f32.mrf.mxu0
    %v1193 = vadd.f32 0.0, %v1192
    %1194 = vdwg.mxu0
    %v1195 = vadd.f32 %v1172, %v1193
    %v1196 = vxor.u32 %v1195, 2147483648
    %v1197 = vmul.f32 %v1196, 1.442695
    %v1198 = vpow.pop %v1197
    %v1199 = vadd.f32 %v1198, 1.0
    %v1200 = vrcp.pop %v1199
    %v1201 = vmul.f32 %v1199, %v1200
    %v1202 = vsub.f32 1.0, %v1201
    %v1203 = vmul.f32 %v1200, %v1202
    %v1204 = vadd.f32 %v1200, %v1203
    %vm1205 = vweird.f32 %v1199
    %vm1206 = vweird.f32 %v1200
    %vm1207 = vmor %vm1205, %vm1206
    %v1208 = vsel %vm1207, %v1200, %v1204
    %v1209 = vand.u32 2147483647, %v1199
    %vm1210 = vcmp.eq.f32.partialorder %v1209, 8.507059e+37
    %v1211 = vand.u32 %v1199, 2147483648
    %v1212 = vor.u32 1.1754944e-38, %v1211
    %v1213 = vsel %vm1210, %v1212, %v1208
    %v1214 = vmul.f32 1.0, %v1213
    %v1215 = vtanh.pop %v1195
    %v1216 = vmul.f32 %v1214, %v1160
    %1218 = vrot.lane.b32.xlu0 %v1215, 64
    %v1219 = vpop.permute.xlu0 %1218
    %v1221 = vmul.f32 %v1214, %v1219
    %1223 = vrot.lane.b32.xlu0 %v1221, 32
    %v1224 = vpop.permute.xlu0 %1223
    %v1226 = vadd.f32 %v1216, %v1224
    %v1227 = vtanh.pop %v1226
    %1229 = vrot.lane.b32.xlu0 %v1227, 64
    %v1230 = vpop.permute.xlu0 %1229
    %v1232 = vmul.f32 %v1214, %v1230
    %1234 = vrot.lane.b32.xlu0 %v1232, 32
    %v1235 = vpop.permute.xlu0 %1234
    %1237 = vst.msk [vmem:[%s595] sm:$0xff] %vm151, %v1235
    %v1238 = vld [vmem:[%s597] sm:$0xff]
    %v1239 = vsel %vm151, %v1235, 0
    %1241 = vmatpush.msra.mxu0 0.0
    %1242 = vmatpush.msra.mxu0 0.0
    %1243 = vmatpush.msra.mxu0 0.0
    %1244 = vmatpush.msra.mxu0 0.0
    %1245 = vmatpush.msra.mxu0 0.0
    %1246 = vmatpush.msra.mxu0 0.0
    %1247 = vmatpush.msra.mxu0 0.0
    %1248 = vmatpush.msra.mxu0 0.0
    %1249 = vmatpush.msra.mxu0 0.0
    %1250 = vmatpush.msra.mxu0 0.0
    %1251 = vmatpush.msra.mxu0 0.0
    %1252 = vmatpush.msra.mxu0 0.0
    %1253 = vmatpush.msra.mxu0 %v811
    %1254 = vmatpush.msra.mxu0 %v810
    %1255 = vmatpush.msra.mxu0 %v809
    %1256 = vmatpush.msra.mxu0 %v808
    %1257 = vmatmul.f32.gmra.mxu0 %v1239
    %v1258 = vpop.f32.mrf.mxu0
    %v1259 = vadd.f32 0.0, %v1258
    %1260 = vdwg.mxu0
    %v1261 = vadd.f32 %v1238, %v1259
    %v1262 = vxor.u32 %v1261, 2147483648
    %v1263 = vmul.f32 %v1262, 1.442695
    %v1264 = vpow.pop %v1263
    %v1265 = vadd.f32 %v1264, 1.0
    %v1266 = vrcp.pop %v1265
    %v1267 = vmul.f32 %v1265, %v1266
    %v1268 = vsub.f32 1.0, %v1267
    %v1269 = vmul.f32 %v1266, %v1268
    %v1270 = vadd.f32 %v1266, %v1269
    %vm1271 = vweird.f32 %v1265
    %vm1272 = vweird.f32 %v1266
    %vm1273 = vmor %vm1271, %vm1272
    %v1274 = vsel %vm1273, %v1266, %v1270
    %v1275 = vand.u32 2147483647, %v1265
    %vm1276 = vcmp.eq.f32.partialorder %v1275, 8.507059e+37
    %v1277 = vand.u32 %v1265, 2147483648
    %v1278 = vor.u32 1.1754944e-38, %v1277
    %v1279 = vsel %vm1276, %v1278, %v1274
    %v1280 = vmul.f32 1.0, %v1279
    %v1281 = vtanh.pop %v1261
    %v1282 = vmul.f32 %v1280, %v1226
    %1284 = vrot.lane.b32.xlu0 %v1281, 64
    %v1285 = vpop.permute.xlu0 %1284
    %v1287 = vmul.f32 %v1280, %v1285
    %1289 = vrot.lane.b32.xlu0 %v1287, 32
    %v1290 = vpop.permute.xlu0 %1289
    %v1292 = vadd.f32 %v1282, %v1290
    %v1293 = vtanh.pop %v1292
    %1295 = vrot.lane.b32.xlu0 %v1293, 64
    %v1296 = vpop.permute.xlu0 %1295
    %v1298 = vmul.f32 %v1280, %v1296
    %1300 = vrot.lane.b32.xlu0 %v1298, 32
    %v1301 = vpop.permute.xlu0 %1300
    %1303 = vst.msk [vmem:[%s663] sm:$0xff] %vm151, %v1301
    %v1304 = vld [vmem:[%s665] sm:$0xff]
    %v1305 = vsel %vm151, %v1301, 0
    %1307 = vmatpush.msra.mxu0 0.0
    %1308 = vmatpush.msra.mxu0 0.0
    %1309 = vmatpush.msra.mxu0 0.0
    %1310 = vmatpush.msra.mxu0 0.0
    %1311 = vmatpush.msra.mxu0 0.0
    %1312 = vmatpush.msra.mxu0 0.0
    %1313 = vmatpush.msra.mxu0 0.0
    %1314 = vmatpush.msra.mxu0 0.0
    %1315 = vmatpush.msra.mxu0 0.0
    %1316 = vmatpush.msra.mxu0 0.0
    %1317 = vmatpush.msra.mxu0 0.0
    %1318 = vmatpush.msra.mxu0 0.0
    %1319 = vmatpush.msra.mxu0 %v811
    %1320 = vmatpush.msra.mxu0 %v810
    %1321 = vmatpush.msra.mxu0 %v809
    %1322 = vmatpush.msra.mxu0 %v808
    %1323 = vmatmul.f32.gmra.mxu0 %v1305
    %v1324 = vpop.f32.mrf.mxu0
    %v1325 = vadd.f32 0.0, %v1324
    %1326 = vdwg.mxu0
    %v1327 = vadd.f32 %v1304, %v1325
    %v1328 = vxor.u32 %v1327, 2147483648
    %v1329 = vmul.f32 %v1328, 1.442695
    %v1330 = vpow.pop %v1329
    %v1331 = vadd.f32 %v1330, 1.0
    %v1332 = vrcp.pop %v1331
    %v1333 = vmul.f32 %v1331, %v1332
    %v1334 = vsub.f32 1.0, %v1333
    %v1335 = vmul.f32 %v1332, %v1334
    %v1336 = vadd.f32 %v1332, %v1335
    %vm1337 = vweird.f32 %v1331
    %vm1338 = vweird.f32 %v1332
    %vm1339 = vmor %vm1337, %vm1338
    %v1340 = vsel %vm1339, %v1332, %v1336
    %v1341 = vand.u32 2147483647, %v1331
    %vm1342 = vcmp.eq.f32.partialorder %v1341, 8.507059e+37
    %v1343 = vand.u32 %v1331, 2147483648
    %v1344 = vor.u32 1.1754944e-38, %v1343
    %v1345 = vsel %vm1342, %v1344, %v1340
    %v1346 = vmul.f32 1.0, %v1345
    %v1347 = vtanh.pop %v1327
    %v1348 = vmul.f32 %v1346, %v1292
    %1350 = vrot.lane.b32.xlu0 %v1347, 64
    %v1351 = vpop.permute.xlu0 %1350
    %v1353 = vmul.f32 %v1346, %v1351
    %1355 = vrot.lane.b32.xlu0 %v1353, 32
    %v1356 = vpop.permute.xlu0 %1355
    %v1358 = vadd.f32 %v1348, %v1356
    %v1359 = vtanh.pop %v1358
    %1361 = vrot.lane.b32.xlu0 %v1359, 64
    %v1362 = vpop.permute.xlu0 %1361
    %v1364 = vmul.f32 %v1346, %v1362
    %1366 = vrot.lane.b32.xlu0 %v1364, 32
    %v1367 = vpop.permute.xlu0 %1366
    %1369 = vst.msk [vmem:[%s731] sm:$0xff] %vm151, %v1367
    %v1370 = vld [vmem:[%s733] sm:$0xff]
    %v1371 = vsel %vm151, %v1367, 0
    %1373 = vmatpush.msra.mxu0 0.0
    %1374 = vmatpush.msra.mxu0 0.0
    %1375 = vmatpush.msra.mxu0 0.0
    %1376 = vmatpush.msra.mxu0 0.0
    %1377 = vmatpush.msra.mxu0 0.0
    %1378 = vmatpush.msra.mxu0 0.0
    %1379 = vmatpush.msra.mxu0 0.0
    %1380 = vmatpush.msra.mxu0 0.0
    %1381 = vmatpush.msra.mxu0 0.0
    %1382 = vmatpush.msra.mxu0 0.0
    %1383 = vmatpush.msra.mxu0 0.0
    %1384 = vmatpush.msra.mxu0 0.0
    %1385 = vmatpush.msra.mxu0 %v811
    %1386 = vmatpush.msra.mxu0 %v810
    %1387 = vmatpush.msra.mxu0 %v809
    %1388 = vmatpush.msra.mxu0 %v808
    %1389 = vmatmul.f32.gmra.mxu0 %v1371
    %v1390 = vpop.f32.mrf.mxu0
    %v1391 = vadd.f32 0.0, %v1390
    %1392 = vdwg.mxu0
    %v1393 = vadd.f32 %v1370, %v1391
    %v1394 = vxor.u32 %v1393, 2147483648
    %v1395 = vmul.f32 %v1394, 1.442695
    %v1396 = vpow.pop %v1395
    %v1397 = vadd.f32 %v1396, 1.0
    %v1398 = vrcp.pop %v1397
    %v1399 = vmul.f32 %v1397, %v1398
    %v1400 = vsub.f32 1.0, %v1399
    %v1401 = vmul.f32 %v1398, %v1400
    %v1402 = vadd.f32 %v1398, %v1401
    %vm1403 = vweird.f32 %v1397
    %vm1404 = vweird.f32 %v1398
    %vm1405 = vmor %vm1403, %vm1404
    %v1406 = vsel %vm1405, %v1398, %v1402
    %v1407 = vand.u32 2147483647, %v1397
    %vm1408 = vcmp.eq.f32.partialorder %v1407, 8.507059e+37
    %v1409 = vand.u32 %v1397, 2147483648
    %v1410 = vor.u32 1.1754944e-38, %v1409
    %v1411 = vsel %vm1408, %v1410, %v1406
    %v1412 = vmul.f32 1.0, %v1411
    %v1413 = vtanh.pop %v1393
    %v1414 = vmul.f32 %v1412, %v1358
    %1416 = vrot.lane.b32.xlu0 %v1413, 64
    %v1417 = vpop.permute.xlu0 %1416
    %v1419 = vmul.f32 %v1412, %v1417
    %1421 = vrot.lane.b32.xlu0 %v1419, 32
    %v1422 = vpop.permute.xlu0 %1421
    %v1424 = vadd.f32 %v1414, %v1422
    %v1425 = vtanh.pop %v1424
    %1427 = vrot.lane.b32.xlu0 %v1425, 64
    %v1428 = vpop.permute.xlu0 %1427
    %v1430 = vmul.f32 %v1412, %v1428
    %1432 = vrot.lane.b32.xlu0 %v1430, 32
    %v1433 = vpop.permute.xlu0 %1432
    %1435 = vst.msk [vmem:[%s799] sm:$0xff] %vm151, %v1433
    %s1436 = scalar_lea.vmem [#allocation11], 8
    %1437 = vst.msk [vmem:[%s1436] sm:$0xff] %vm151, %v1433
    %1439 = vrot.lane.b32.xlu0 %v1424, 96
    %v1440 = vpop.permute.xlu0 %1439
    %s1442 = scalar_lea.vmem [#allocation11], 24
    %1443 = vst.msk [vmem:[%s1442] sm:$0xff] %vm151, %v1440
    %v1444 = vld [vmem:[%s799] sm:$0xff]
    %v1445 = vld [vmem:[#allocation9 + $0x90] sm:$0xff]
    %v1446 = vld [vmem:[#allocation9 + $0x98] sm:$0xff]
    %v1447 = vld [vmem:[#allocation9 + $0xa0] sm:$0xff]
    %v1448 = vld [vmem:[#allocation9 + $0xa8] sm:$0xff]
    %v1449 = vld [vmem:[#allocation9 + $0xb3] sm:$0x1]
    %v1450 = vperm.slane %v1449, 0
    %v1452 = vsel %vm151, %v1444, 0
    %1454 = vmatpush.msra.mxu0 0.0
    %1455 = vmatpush.msra.mxu0 0.0
    %1456 = vmatpush.msra.mxu0 0.0
    %1457 = vmatpush.msra.mxu0 0.0
    %1458 = vmatpush.msra.mxu0 0.0
    %1459 = vmatpush.msra.mxu0 0.0
    %1460 = vmatpush.msra.mxu0 0.0
    %1461 = vmatpush.msra.mxu0 0.0
    %1462 = vmatpush.msra.mxu0 0.0
    %1463 = vmatpush.msra.mxu0 0.0
    %1464 = vmatpush.msra.mxu0 0.0
    %1465 = vmatpush.msra.mxu0 0.0
    %1466 = vmatpush.msra.mxu0 %v1448
    %1467 = vmatpush.msra.mxu0 %v1447
    %1468 = vmatpush.msra.mxu0 %v1446
    %1469 = vmatpush.msra.mxu0 %v1445
    %1470 = vmatmul.f32.gmra.mxu0 %v1452
    %v1471 = vpop.f32.mrf.mxu0
    %v1472 = vadd.f32 %v1450, %v1471
    %1473 = vdwg.mxu0
    %1474 = vst [vmem:[#allocation10] sm:$0xff] %v1472
    // Predicated region
    $region26: #{tpu_custom_call.1} parent=1 // pred_check
      _
    $region27: #{tpu_custom_call.1} parent=1 // pred_check_branch
      %1476 = sbr.rel (0) target = $region29
    $region28: #{tpu_custom_call.1} parent=1 // pred_region
      %1478 = vsyncadd [#allocation6], 0
      %s1480 = sshll.u32 [#allocation10], 4
      %s1481 = int_to_ptr.vmem [resolvable:$true] %s1480
      %s1482 = sshll.u32 %s3, 4
      %s1483 = int_to_ptr.hbm [resolvable:$true] %s1482
      %1485 = dma.vmem_to_hbm [thread:$0]  %s1481, 128, %s1483, [#allocation6]
    $region29: #{tpu_custom_call.1} parent=1 // pred_fallthru
      _
    // Predicated region
    $region30: #{tpu_custom_call.1} parent=1 // pred_check
      _
    $region31: #{tpu_custom_call.1} parent=1 // pred_check_branch
      %1487 = sbr.rel (0) target = $region33
    $region32: #{tpu_custom_call.1} parent=1 // pred_region
      %1489 = vsyncadd [#allocation12], 0
      %s1490 = sshll.u32 [#allocation11], 4
      %s1491 = int_to_ptr.vmem [resolvable:$true] %s1490
      %s1492 = sshll.u32 %s4, 4
      %s1493 = int_to_ptr.hbm [resolvable:$true] %s1492
      %1498 = dma.vmem_to_hbm [thread:$0]  %s1491, 512, %s1493, [#allocation12], 128, 128, 8
    $region33: #{tpu_custom_call.1} parent=1 // pred_fallthru
      _
    // Predicated region
    $region34: #{tpu_custom_call.1} parent=1 // pred_check
      _
    $region35: #{tpu_custom_call.1} parent=1 // pred_check_branch
      %1500 = sbr.rel (0) target = $region37
    $region36: #{tpu_custom_call.1} parent=1 // pred_region
      %1502 = dma.done [#allocation6], 128
    $region37: #{tpu_custom_call.1} parent=1 // pred_fallthru
      _
    // Predicated region
    $region38: #{tpu_custom_call.1} parent=1 // pred_check
      _
    $region39: #{tpu_custom_call.1} parent=1 // pred_check_branch
      %1504 = sbr.rel (0) target = $region41
    $region40: #{tpu_custom_call.1} parent=1 // pred_region
      %1506 = dma.done [#allocation12], 512
    $region41: #{tpu_custom_call.1} parent=1 // pred_fallthru
      _
    %1507 = vsyncpa [#allocation5], 1
    %1508 = vsyncpa [#allocation8], 1
    %1509 = vsyncpa [#allocation6], 1
    %1510 = vsyncpa [#allocation12], 1

</llo_original>
